<compile_context>
chip_gen: v7x
topology: tpu7x:2x2x1
jax: 0.10.0
libtpu: 0.0.40
codegen_flags: <defaults>
</compile_context>

<pallas_src>
import math

import jax
import jax.numpy as jnp
from jax import lax
from jax.experimental import pallas as pl
from jax.experimental.pallas import tpu as pltpu

# ----- model hyper-parameters (small, consistent with the module) -----
BATCH = 2
SEQ = 8
D_MODEL = 32
NUM_HEADS = 4
D_FF = 64
HEAD_DIM = D_MODEL // NUM_HEADS
LN_EPS = 1e-5  # PyTorch nn.LayerNorm default

# ----- packed-operand layouts (lane offsets within the slabs) -----
# weight slab (D, 4D + D_FF):  [wqkv | wo | w1]
W_OFF_QKV = 0
W_OFF_O = 3 * D_MODEL
W_OFF_W1 = 4 * D_MODEL
W_SLAB_W = 4 * D_MODEL + D_FF
# bias slab (1, 7D + D_FF):    [bqkv | bo | b1 | b2 | gamma | beta]
B_OFF_QKV = 0
B_OFF_O = 3 * D_MODEL
B_OFF_B1 = 4 * D_MODEL
B_OFF_B2 = 4 * D_MODEL + D_FF
B_OFF_GAMMA = B_OFF_B2 + D_MODEL
B_OFF_BETA = B_OFF_GAMMA + D_MODEL
B_SLAB_W = B_OFF_BETA + D_MODEL


def _layer_norm(x, gamma, beta):
    mu = jnp.mean(x, axis=-1, keepdims=True)
    var = jnp.mean((x - mu) ** 2, axis=-1, keepdims=True)
    return (x - mu) * lax.rsqrt(var + LN_EPS) * gamma + beta


def encoder_block_kernel(x_ref, w_ref, w2_ref, b_ref, o_ref, attn_sc):
    # x_ref: (B*S, D) f32 ; w_ref: (D, 4D+D_FF) bf16 ; w2_ref: (D_FF, D) bf16
    # b_ref: (1, 7D+D_FF) f32 ; attn_sc: (B*S, D) f32 VMEM scratch
    x = x_ref[...].astype(jnp.float32)
    x_bf = x.astype(jnp.bfloat16)

    # ------------- fused QKV projection (one bf16 MXU push, lane width 3D) ----
    # Q columns of the slab were pre-scaled by 1/sqrt(head_dim) host-side.
    qkv = (jnp.dot(x_bf, w_ref[:, W_OFF_QKV:W_OFF_QKV + 3 * D_MODEL],
                   preferred_element_type=jnp.float32)
           + b_ref[:, B_OFF_QKV:B_OFF_QKV + 3 * D_MODEL])
    q = qkv[:, 0:D_MODEL]
    k = qkv[:, D_MODEL:2 * D_MODEL]
    v = qkv[:, 2 * D_MODEL:3 * D_MODEL]

    # ------------- multi-head self-attention (static per batch / head) --------
    for b in range(BATCH):                    # static unrolled (B = 2)
        rs = slice(b * SEQ, (b + 1) * SEQ)
        for h in range(NUM_HEADS):            # static unrolled (H = 4)
            cs = slice(h * HEAD_DIM, (h + 1) * HEAD_DIM)
            qh = q[rs, cs].astype(jnp.bfloat16)
            kh = k[rs, cs].astype(jnp.bfloat16)
            vh = v[rs, cs].astype(jnp.bfloat16)
            # contract last dims of both operands -> no explicit kh transpose
            scores = lax.dot_general(qh, kh, (((1,), (1,)), ((), ())),
                                     preferred_element_type=jnp.float32)
            scores = scores - jnp.max(scores, axis=-1, keepdims=True)
            p = jnp.exp(scores)
            # reciprocal on the EUP slot instead of a VALU divide
            p = p * pl.reciprocal(jnp.sum(p, axis=-1, keepdims=True), approx=True)
            # TODO(synk): dropout (attention probs + both residual paths) omitted — eval-mode identity.
            ho = jnp.dot(p.astype(jnp.bfloat16), vh,
                         preferred_element_type=jnp.float32)
            # independent static-slice store into VMEM scratch: no serial blend chain
            attn_sc[rs, cs] = ho

    attn = attn_sc[...]
    attn = (jnp.dot(attn.astype(jnp.bfloat16),
                    w_ref[:, W_OFF_O:W_OFF_O + D_MODEL],
                    preferred_element_type=jnp.float32)
            + b_ref[:, B_OFF_O:B_OFF_O + D_MODEL])

    gamma = b_ref[:, B_OFF_GAMMA:B_OFF_GAMMA + D_MODEL]   # (1, D)
    beta = b_ref[:, B_OFF_BETA:B_OFF_BETA + D_MODEL]      # (1, D)

    # residual + shared LayerNorm (1st use) — f32 math
    x = _layer_norm(x + attn, gamma, beta)

    # ------------- feed forward: Linear -> ReLU -> Linear ---------------------
    h1 = (jnp.dot(x.astype(jnp.bfloat16),
                  w_ref[:, W_OFF_W1:W_OFF_W1 + D_FF],
                  preferred_element_type=jnp.float32)
          + b_ref[:, B_OFF_B1:B_OFF_B1 + D_FF])
    h1 = jnp.maximum(h1, 0.0)
    ff = (jnp.dot(h1.astype(jnp.bfloat16), w2_ref[...],
                  preferred_element_type=jnp.float32)
          + b_ref[:, B_OFF_B2:B_OFF_B2 + D_MODEL])

    # residual + shared LayerNorm (2nd use, same gamma/beta)
    x = _layer_norm(x + ff, gamma, beta)

    # single lane-contiguous (B*S, D) store
    o_ref[...] = x.astype(o_ref.dtype)


def encoder_block(x, params):
    B, S, D = x.shape
    x2 = x.reshape(B * S, D)  # layout-free merge of leading dims onto sublanes

    # Fold the attention scale into the Q projection (weights + bias) host-side.
    scale = 1.0 / math.sqrt(HEAD_DIM)
    wq = params["wq"] * scale
    bq = params["bq"] * scale

    # Pack 11 tiny operands into 3 slabs (plus x): fewer DMA descriptors & tiles.
    w_slab = jnp.concatenate(
        [wq, params["wk"], params["wv"], params["wo"], params["w1"]],
        axis=1).astype(jnp.bfloat16)                                   # (D, 4D+D_FF)
    w2 = params["w2"].astype(jnp.bfloat16)                             # (D_FF, D)
    b_slab = jnp.concatenate(
        [bq, params["bk"], params["bv"], params["bo"],
         params["b1"], params["b2"], params["gamma"], params["beta"]],
        axis=1).astype(jnp.float32)                                    # (1, 7D+D_FF)
    assert w_slab.shape == (D_MODEL, W_SLAB_W)
    assert b_slab.shape == (1, B_SLAB_W)

    vmem = pl.BlockSpec(memory_space=pltpu.MemorySpace.VMEM)  # whole array in VMEM, no grid
    out = pl.pallas_call(
        encoder_block_kernel,
        out_shape=jax.ShapeDtypeStruct((B * S, D), x.dtype),
        in_specs=[vmem, vmem, vmem, vmem],
        out_specs=vmem,
        scratch_shapes=[pltpu.VMEM((B * S, D), jnp.float32)],
    )(x2, w_slab, w2, b_slab)
    return out.reshape(B, S, D)


# ---------------- pure-JAX reference (for a sanity check) ----------------
def encoder_block_ref(x, p):
    def ln(y):
        mu = jnp.mean(y, axis=-1, keepdims=True)
        var = jnp.mean((y - mu) ** 2, axis=-1, keepdims=True)
        return (y - mu) / jnp.sqrt(var + LN_EPS) * p["gamma"][0] + p["beta"][0]

    B, S, D = x.shape
    q = x @ p["wq"] + p["bq"][0]
    k = x @ p["wk"] + p["bk"][0]
    v = x @ p["wv"] + p["bv"][0]
    q = q.reshape(B, S, NUM_HEADS, HEAD_DIM).transpose(0, 2, 1, 3)
    k = k.reshape(B, S, NUM_HEADS, HEAD_DIM).transpose(0, 2, 1, 3)
    v = v.reshape(B, S, NUM_HEADS, HEAD_DIM).transpose(0, 2, 1, 3)
    scores = jnp.einsum("bhqd,bhkd->bhqk", q, k) / math.sqrt(HEAD_DIM)
    pr = jax.nn.softmax(scores, axis=-1)
    attn = jnp.einsum("bhqk,bhkd->bhqd", pr, v).transpose(0, 2, 1, 3).reshape(B, S, D)
    attn = attn @ p["wo"] + p["bo"][0]
    x = ln(x + attn)
    ff = jnp.maximum(x @ p["w1"] + p["b1"][0], 0.0) @ p["w2"] + p["b2"][0]
    return ln(x + ff)


def init_params(key):
    keys = jax.random.split(key, 10)
    s = 0.05
    params = {
        "wq": s * jax.random.normal(keys[0], (D_MODEL, D_MODEL), jnp.float32),
        "bq": s * jax.random.normal(keys[1], (1, D_MODEL), jnp.float32),
        "wk": s * jax.random.normal(keys[2], (D_MODEL, D_MODEL), jnp.float32),
        "bk": s * jax.random.normal(keys[3], (1, D_MODEL), jnp.float32),
        "wv": s * jax.random.normal(keys[4], (D_MODEL, D_MODEL), jnp.float32),
        "bv": s * jax.random.normal(keys[5], (1, D_MODEL), jnp.float32),
        "wo": s * jax.random.normal(keys[6], (D_MODEL, D_MODEL), jnp.float32),
        "bo": s * jax.random.normal(keys[7], (1, D_MODEL), jnp.float32),
        "w1": s * jax.random.normal(keys[8], (D_MODEL, D_FF), jnp.float32),
        "b1": jnp.zeros((1, D_FF), jnp.float32),
        "w2": s * jax.random.normal(keys[9], (D_FF, D_MODEL), jnp.float32),
        "b2": jnp.zeros((1, D_MODEL), jnp.float32),
        "gamma": jnp.ones((1, D_MODEL), jnp.float32),
        "beta": jnp.zeros((1, D_MODEL), jnp.float32),
    }
    return params


if __name__ == "__main__":
    key = jax.random.PRNGKey(0)
    kx, kp = jax.random.split(key)
    x = jax.random.normal(kx, (BATCH, SEQ, D_MODEL), jnp.float32)
    params = init_params(kp)

    out = encoder_block(x, params)
    out = jax.block_until_ready(out)

    ref = encoder_block_ref(x, params)
    assert out.shape == (BATCH, SEQ, D_MODEL)
    # tolerance accounts for bf16 matmul operands + the EUP approximate
    # reciprocal in the softmax (accumulation / softmax / LayerNorm stay f32)
    assert jnp.allclose(out, ref, atol=2e-2, rtol=2e-2), "mismatch vs reference"

    print("KERNEL_OK")
</pallas_src>

<mosaic_0001>
module attributes {stable_mosaic.version = 11 : i64} {
  func.func @encoder_block_kernel(%arg0: memref<16x32xf32, #tpu.memory_space<vmem>>, %arg1: memref<32x192xbf16, #tpu.memory_space<vmem>>, %arg2: memref<64x32xbf16, #tpu.memory_space<vmem>>, %arg3: memref<1x288xf32, #tpu.memory_space<vmem>>, %arg4: memref<16x32xf32, #tpu.memory_space<vmem>>, %arg5: memref<16x32xf32, #tpu.memory_space<vmem>>) attributes {dimension_semantics = [], scalar_prefetch = 0 : i64, scratch_operands = 1 : i64, tpu.core_type = #tpu.core_type<tc>} {
    %c0 = arith.constant 0 : index
    %c0_0 = arith.constant 0 : index
    %0 = vector.load %arg0[%c0, %c0_0] : memref<16x32xf32, #tpu.memory_space<vmem>>, vector<16x32xf32>
    %1 = arith.truncf %0 : vector<16x32xf32> to vector<16x32xbf16>
    %c0_1 = arith.constant 0 : index
    %c0_2 = arith.constant 0 : index
    %2 = vector.load %arg1[%c0_1, %c0_2] : memref<32x192xbf16, #tpu.memory_space<vmem>>, vector<32x96xbf16>
    %cst = arith.constant dense<0.000000e+00> : vector<16x96xf32>
    %3 = tpu.matmul %1, %2, %cst {dimension_numbers = #tpu.dot_dimension_numbers<[1], [0], [0], [1], [0, 0, 1, 1], [], []>} : vector<16x32xbf16>, vector<32x96xbf16>, vector<16x96xf32> -> vector<16x96xf32>
    %c0_3 = arith.constant 0 : index
    %c0_4 = arith.constant 0 : index
    %4 = vector.load %arg3[%c0_3, %c0_4] : memref<1x288xf32, #tpu.memory_space<vmem>>, vector<1x96xf32>
    %5 = vector.broadcast %4 : vector<1x96xf32> to vector<16x96xf32>
    %6 = arith.addf %3, %5 : vector<16x96xf32>
    %7 = vector.extract_strided_slice %6 {offsets = [0, 0], sizes = [16, 32], strides = [1, 1]} : vector<16x96xf32> to vector<16x32xf32>
    %8 = vector.extract_strided_slice %6 {offsets = [0, 32], sizes = [16, 32], strides = [1, 1]} : vector<16x96xf32> to vector<16x32xf32>
    %9 = vector.extract_strided_slice %6 {offsets = [0, 64], sizes = [16, 32], strides = [1, 1]} : vector<16x96xf32> to vector<16x32xf32>
    %10 = vector.extract_strided_slice %7 {offsets = [0, 0], sizes = [8, 8], strides = [1, 1]} : vector<16x32xf32> to vector<8x8xf32>
    %11 = arith.truncf %10 : vector<8x8xf32> to vector<8x8xbf16>
    %12 = vector.extract_strided_slice %8 {offsets = [0, 0], sizes = [8, 8], strides = [1, 1]} : vector<16x32xf32> to vector<8x8xf32>
    %13 = arith.truncf %12 : vector<8x8xf32> to vector<8x8xbf16>
    %14 = vector.extract_strided_slice %9 {offsets = [0, 0], sizes = [8, 8], strides = [1, 1]} : vector<16x32xf32> to vector<8x8xf32>
    %15 = arith.truncf %14 : vector<8x8xf32> to vector<8x8xbf16>
    %cst_5 = arith.constant dense<0.000000e+00> : vector<8x8xf32>
    %16 = tpu.matmul %11, %13, %cst_5 {dimension_numbers = #tpu.dot_dimension_numbers<[1], [1], [0], [0], [0, 0, 1, 0], [], []>} : vector<8x8xbf16>, vector<8x8xbf16>, vector<8x8xf32> -> vector<8x8xf32>
    %cst_6 = arith.constant dense<0xFF800000> : vector<8xf32>
    %17 = vector.multi_reduction <maximumf>, %16, %cst_6 [1] : vector<8x8xf32> to vector<8xf32>
    %18 = vector.shape_cast %17 : vector<8xf32> to vector<8x1xf32>
    %19 = vector.broadcast %18 : vector<8x1xf32> to vector<8x8xf32>
    %20 = arith.subf %16, %19 : vector<8x8xf32>
    %21 = math.exp %20 : vector<8x8xf32>
    %cst_7 = arith.constant dense<0.000000e+00> : vector<8xf32>
    %22 = vector.multi_reduction <add>, %21, %cst_7 [1] : vector<8x8xf32> to vector<8xf32>
    %23 = vector.shape_cast %22 : vector<8xf32> to vector<8x1xf32>
    %24 = tpu.reciprocal %23 {approx = true} : vector<8x1xf32> -> vector<8x1xf32>
    %25 = vector.broadcast %24 : vector<8x1xf32> to vector<8x8xf32>
    %26 = arith.mulf %21, %25 : vector<8x8xf32>
    %27 = arith.truncf %26 : vector<8x8xf32> to vector<8x8xbf16>
    %cst_8 = arith.constant dense<0.000000e+00> : vector<8x8xf32>
    %28 = tpu.matmul %27, %15, %cst_8 {dimension_numbers = #tpu.dot_dimension_numbers<[1], [0], [0], [1], [0, 0, 1, 1], [], []>} : vector<8x8xbf16>, vector<8x8xbf16>, vector<8x8xf32> -> vector<8x8xf32>
    %c0_9 = arith.constant 0 : index
    %c0_10 = arith.constant 0 : index
    %29 = vector.load %arg5[%c0_9, %c0_10] : memref<16x32xf32, #tpu.memory_space<vmem>>, vector<8x8xf32>
    tpu.vector_store %arg5[%c0_9, %c0_10], %28 {strides = array<i32>} : memref<16x32xf32, #tpu.memory_space<vmem>>, vector<8x8xf32>,
    %30 = vector.extract_strided_slice %7 {offsets = [0, 8], sizes = [8, 8], strides = [1, 1]} : vector<16x32xf32> to vector<8x8xf32>
    %31 = arith.truncf %30 : vector<8x8xf32> to vector<8x8xbf16>
    %32 = vector.extract_strided_slice %8 {offsets = [0, 8], sizes = [8, 8], strides = [1, 1]} : vector<16x32xf32> to vector<8x8xf32>
    %33 = arith.truncf %32 : vector<8x8xf32> to vector<8x8xbf16>
    %34 = vector.extract_strided_slice %9 {offsets = [0, 8], sizes = [8, 8], strides = [1, 1]} : vector<16x32xf32> to vector<8x8xf32>
    %35 = arith.truncf %34 : vector<8x8xf32> to vector<8x8xbf16>
    %cst_11 = arith.constant dense<0.000000e+00> : vector<8x8xf32>
    %36 = tpu.matmul %31, %33, %cst_11 {dimension_numbers = #tpu.dot_dimension_numbers<[1], [1], [0], [0], [0, 0, 1, 0], [], []>} : vector<8x8xbf16>, vector<8x8xbf16>, vector<8x8xf32> -> vector<8x8xf32>
    %cst_12 = arith.constant dense<0xFF800000> : vector<8xf32>
    %37 = vector.multi_reduction <maximumf>, %36, %cst_12 [1] : vector<8x8xf32> to vector<8xf32>
    %38 = vector.shape_cast %37 : vector<8xf32> to vector<8x1xf32>
    %39 = vector.broadcast %38 : vector<8x1xf32> to vector<8x8xf32>
    %40 = arith.subf %36, %39 : vector<8x8xf32>
    %41 = math.exp %40 : vector<8x8xf32>
    %cst_13 = arith.constant dense<0.000000e+00> : vector<8xf32>
    %42 = vector.multi_reduction <add>, %41, %cst_13 [1] : vector<8x8xf32> to vector<8xf32>
    %43 = vector.shape_cast %42 : vector<8xf32> to vector<8x1xf32>
    %44 = tpu.reciprocal %43 {approx = true} : vector<8x1xf32> -> vector<8x1xf32>
    %45 = vector.broadcast %44 : vector<8x1xf32> to vector<8x8xf32>
    %46 = arith.mulf %41, %45 : vector<8x8xf32>
    %47 = arith.truncf %46 : vector<8x8xf32> to vector<8x8xbf16>
    %cst_14 = arith.constant dense<0.000000e+00> : vector<8x8xf32>
    %48 = tpu.matmul %47, %35, %cst_14 {dimension_numbers = #tpu.dot_dimension_numbers<[1], [0], [0], [1], [0, 0, 1, 1], [], []>} : vector<8x8xbf16>, vector<8x8xbf16>, vector<8x8xf32> -> vector<8x8xf32>
    %c0_15 = arith.constant 0 : index
    %c8 = arith.constant 8 : index
    %49 = vector.load %arg5[%c0_15, %c8] : memref<16x32xf32, #tpu.memory_space<vmem>>, vector<8x8xf32>
    tpu.vector_store %arg5[%c0_15, %c8], %48 {strides = array<i32>} : memref<16x32xf32, #tpu.memory_space<vmem>>, vector<8x8xf32>,
    %50 = vector.extract_strided_slice %7 {offsets = [0, 16], sizes = [8, 8], strides = [1, 1]} : vector<16x32xf32> to vector<8x8xf32>
    %51 = arith.truncf %50 : vector<8x8xf32> to vector<8x8xbf16>
    %52 = vector.extract_strided_slice %8 {offsets = [0, 16], sizes = [8, 8], strides = [1, 1]} : vector<16x32xf32> to vector<8x8xf32>
    %53 = arith.truncf %52 : vector<8x8xf32> to vector<8x8xbf16>
    %54 = vector.extract_strided_slice %9 {offsets = [0, 16], sizes = [8, 8], strides = [1, 1]} : vector<16x32xf32> to vector<8x8xf32>
    %55 = arith.truncf %54 : vector<8x8xf32> to vector<8x8xbf16>
    %cst_16 = arith.constant dense<0.000000e+00> : vector<8x8xf32>
    %56 = tpu.matmul %51, %53, %cst_16 {dimension_numbers = #tpu.dot_dimension_numbers<[1], [1], [0], [0], [0, 0, 1, 0], [], []>} : vector<8x8xbf16>, vector<8x8xbf16>, vector<8x8xf32> -> vector<8x8xf32>
    %cst_17 = arith.constant dense<0xFF800000> : vector<8xf32>
    %57 = vector.multi_reduction <maximumf>, %56, %cst_17 [1] : vector<8x8xf32> to vector<8xf32>
    %58 = vector.shape_cast %57 : vector<8xf32> to vector<8x1xf32>
    %59 = vector.broadcast %58 : vector<8x1xf32> to vector<8x8xf32>
    %60 = arith.subf %56, %59 : vector<8x8xf32>
    %61 = math.exp %60 : vector<8x8xf32>
    %cst_18 = arith.constant dense<0.000000e+00> : vector<8xf32>
    %62 = vector.multi_reduction <add>, %61, %cst_18 [1] : vector<8x8xf32> to vector<8xf32>
    %63 = vector.shape_cast %62 : vector<8xf32> to vector<8x1xf32>
    %64 = tpu.reciprocal %63 {approx = true} : vector<8x1xf32> -> vector<8x1xf32>
    %65 = vector.broadcast %64 : vector<8x1xf32> to vector<8x8xf32>
    %66 = arith.mulf %61, %65 : vector<8x8xf32>
    %67 = arith.truncf %66 : vector<8x8xf32> to vector<8x8xbf16>
    %cst_19 = arith.constant dense<0.000000e+00> : vector<8x8xf32>
    %68 = tpu.matmul %67, %55, %cst_19 {dimension_numbers = #tpu.dot_dimension_numbers<[1], [0], [0], [1], [0, 0, 1, 1], [], []>} : vector<8x8xbf16>, vector<8x8xbf16>, vector<8x8xf32> -> vector<8x8xf32>
    %c0_20 = arith.constant 0 : index
    %c16 = arith.constant 16 : index
    %69 = vector.load %arg5[%c0_20, %c16] : memref<16x32xf32, #tpu.memory_space<vmem>>, vector<8x8xf32>
    tpu.vector_store %arg5[%c0_20, %c16], %68 {strides = array<i32>} : memref<16x32xf32, #tpu.memory_space<vmem>>, vector<8x8xf32>,
    %70 = vector.extract_strided_slice %7 {offsets = [0, 24], sizes = [8, 8], strides = [1, 1]} : vector<16x32xf32> to vector<8x8xf32>
    %71 = arith.truncf %70 : vector<8x8xf32> to vector<8x8xbf16>
    %72 = vector.extract_strided_slice %8 {offsets = [0, 24], sizes = [8, 8], strides = [1, 1]} : vector<16x32xf32> to vector<8x8xf32>
    %73 = arith.truncf %72 : vector<8x8xf32> to vector<8x8xbf16>
    %74 = vector.extract_strided_slice %9 {offsets = [0, 24], sizes = [8, 8], strides = [1, 1]} : vector<16x32xf32> to vector<8x8xf32>
    %75 = arith.truncf %74 : vector<8x8xf32> to vector<8x8xbf16>
    %cst_21 = arith.constant dense<0.000000e+00> : vector<8x8xf32>
    %76 = tpu.matmul %71, %73, %cst_21 {dimension_numbers = #tpu.dot_dimension_numbers<[1], [1], [0], [0], [0, 0, 1, 0], [], []>} : vector<8x8xbf16>, vector<8x8xbf16>, vector<8x8xf32> -> vector<8x8xf32>
    %cst_22 = arith.constant dense<0xFF800000> : vector<8xf32>
    %77 = vector.multi_reduction <maximumf>, %76, %cst_22 [1] : vector<8x8xf32> to vector<8xf32>
    %78 = vector.shape_cast %77 : vector<8xf32> to vector<8x1xf32>
    %79 = vector.broadcast %78 : vector<8x1xf32> to vector<8x8xf32>
    %80 = arith.subf %76, %79 : vector<8x8xf32>
    %81 = math.exp %80 : vector<8x8xf32>
    %cst_23 = arith.constant dense<0.000000e+00> : vector<8xf32>
    %82 = vector.multi_reduction <add>, %81, %cst_23 [1] : vector<8x8xf32> to vector<8xf32>
    %83 = vector.shape_cast %82 : vector<8xf32> to vector<8x1xf32>
    %84 = tpu.reciprocal %83 {approx = true} : vector<8x1xf32> -> vector<8x1xf32>
    %85 = vector.broadcast %84 : vector<8x1xf32> to vector<8x8xf32>
    %86 = arith.mulf %81, %85 : vector<8x8xf32>
    %87 = arith.truncf %86 : vector<8x8xf32> to vector<8x8xbf16>
    %cst_24 = arith.constant dense<0.000000e+00> : vector<8x8xf32>
    %88 = tpu.matmul %87, %75, %cst_24 {dimension_numbers = #tpu.dot_dimension_numbers<[1], [0], [0], [1], [0, 0, 1, 1], [], []>} : vector<8x8xbf16>, vector<8x8xbf16>, vector<8x8xf32> -> vector<8x8xf32>
    %c0_25 = arith.constant 0 : index
    %c24 = arith.constant 24 : index
    %89 = vector.load %arg5[%c0_25, %c24] : memref<16x32xf32, #tpu.memory_space<vmem>>, vector<8x8xf32>
    tpu.vector_store %arg5[%c0_25, %c24], %88 {strides = array<i32>} : memref<16x32xf32, #tpu.memory_space<vmem>>, vector<8x8xf32>,
    %90 = vector.extract_strided_slice %7 {offsets = [8, 0], sizes = [8, 8], strides = [1, 1]} : vector<16x32xf32> to vector<8x8xf32>
    %91 = arith.truncf %90 : vector<8x8xf32> to vector<8x8xbf16>
    %92 = vector.extract_strided_slice %8 {offsets = [8, 0], sizes = [8, 8], strides = [1, 1]} : vector<16x32xf32> to vector<8x8xf32>
    %93 = arith.truncf %92 : vector<8x8xf32> to vector<8x8xbf16>
    %94 = vector.extract_strided_slice %9 {offsets = [8, 0], sizes = [8, 8], strides = [1, 1]} : vector<16x32xf32> to vector<8x8xf32>
    %95 = arith.truncf %94 : vector<8x8xf32> to vector<8x8xbf16>
    %cst_26 = arith.constant dense<0.000000e+00> : vector<8x8xf32>
    %96 = tpu.matmul %91, %93, %cst_26 {dimension_numbers = #tpu.dot_dimension_numbers<[1], [1], [0], [0], [0, 0, 1, 0], [], []>} : vector<8x8xbf16>, vector<8x8xbf16>, vector<8x8xf32> -> vector<8x8xf32>
    %cst_27 = arith.constant dense<0xFF800000> : vector<8xf32>
    %97 = vector.multi_reduction <maximumf>, %96, %cst_27 [1] : vector<8x8xf32> to vector<8xf32>
    %98 = vector.shape_cast %97 : vector<8xf32> to vector<8x1xf32>
    %99 = vector.broadcast %98 : vector<8x1xf32> to vector<8x8xf32>
    %100 = arith.subf %96, %99 : vector<8x8xf32>
    %101 = math.exp %100 : vector<8x8xf32>
    %cst_28 = arith.constant dense<0.000000e+00> : vector<8xf32>
    %102 = vector.multi_reduction <add>, %101, %cst_28 [1] : vector<8x8xf32> to vector<8xf32>
    %103 = vector.shape_cast %102 : vector<8xf32> to vector<8x1xf32>
    %104 = tpu.reciprocal %103 {approx = true} : vector<8x1xf32> -> vector<8x1xf32>
    %105 = vector.broadcast %104 : vector<8x1xf32> to vector<8x8xf32>
    %106 = arith.mulf %101, %105 : vector<8x8xf32>
    %107 = arith.truncf %106 : vector<8x8xf32> to vector<8x8xbf16>
    %cst_29 = arith.constant dense<0.000000e+00> : vector<8x8xf32>
    %108 = tpu.matmul %107, %95, %cst_29 {dimension_numbers = #tpu.dot_dimension_numbers<[1], [0], [0], [1], [0, 0, 1, 1], [], []>} : vector<8x8xbf16>, vector<8x8xbf16>, vector<8x8xf32> -> vector<8x8xf32>
    %c8_30 = arith.constant 8 : index
    %c0_31 = arith.constant 0 : index
    %109 = vector.load %arg5[%c8_30, %c0_31] : memref<16x32xf32, #tpu.memory_space<vmem>>, vector<8x8xf32>
    tpu.vector_store %arg5[%c8_30, %c0_31], %108 {strides = array<i32>} : memref<16x32xf32, #tpu.memory_space<vmem>>, vector<8x8xf32>,
    %110 = vector.extract_strided_slice %7 {offsets = [8, 8], sizes = [8, 8], strides = [1, 1]} : vector<16x32xf32> to vector<8x8xf32>
    %111 = arith.truncf %110 : vector<8x8xf32> to vector<8x8xbf16>
    %112 = vector.extract_strided_slice %8 {offsets = [8, 8], sizes = [8, 8], strides = [1, 1]} : vector<16x32xf32> to vector<8x8xf32>
    %113 = arith.truncf %112 : vector<8x8xf32> to vector<8x8xbf16>
    %114 = vector.extract_strided_slice %9 {offsets = [8, 8], sizes = [8, 8], strides = [1, 1]} : vector<16x32xf32> to vector<8x8xf32>
    %115 = arith.truncf %114 : vector<8x8xf32> to vector<8x8xbf16>
    %cst_32 = arith.constant dense<0.000000e+00> : vector<8x8xf32>
    %116 = tpu.matmul %111, %113, %cst_32 {dimension_numbers = #tpu.dot_dimension_numbers<[1], [1], [0], [0], [0, 0, 1, 0], [], []>} : vector<8x8xbf16>, vector<8x8xbf16>, vector<8x8xf32> -> vector<8x8xf32>
    %cst_33 = arith.constant dense<0xFF800000> : vector<8xf32>
    %117 = vector.multi_reduction <maximumf>, %116, %cst_33 [1] : vector<8x8xf32> to vector<8xf32>
    %118 = vector.shape_cast %117 : vector<8xf32> to vector<8x1xf32>
    %119 = vector.broadcast %118 : vector<8x1xf32> to vector<8x8xf32>
    %120 = arith.subf %116, %119 : vector<8x8xf32>
    %121 = math.exp %120 : vector<8x8xf32>
    %cst_34 = arith.constant dense<0.000000e+00> : vector<8xf32>
    %122 = vector.multi_reduction <add>, %121, %cst_34 [1] : vector<8x8xf32> to vector<8xf32>
    %123 = vector.shape_cast %122 : vector<8xf32> to vector<8x1xf32>
    %124 = tpu.reciprocal %123 {approx = true} : vector<8x1xf32> -> vector<8x1xf32>
    %125 = vector.broadcast %124 : vector<8x1xf32> to vector<8x8xf32>
    %126 = arith.mulf %121, %125 : vector<8x8xf32>
    %127 = arith.truncf %126 : vector<8x8xf32> to vector<8x8xbf16>
    %cst_35 = arith.constant dense<0.000000e+00> : vector<8x8xf32>
    %128 = tpu.matmul %127, %115, %cst_35 {dimension_numbers = #tpu.dot_dimension_numbers<[1], [0], [0], [1], [0, 0, 1, 1], [], []>} : vector<8x8xbf16>, vector<8x8xbf16>, vector<8x8xf32> -> vector<8x8xf32>
    %c8_36 = arith.constant 8 : index
    %c8_37 = arith.constant 8 : index
    %129 = vector.load %arg5[%c8_36, %c8_37] : memref<16x32xf32, #tpu.memory_space<vmem>>, vector<8x8xf32>
    tpu.vector_store %arg5[%c8_36, %c8_37], %128 {strides = array<i32>} : memref<16x32xf32, #tpu.memory_space<vmem>>, vector<8x8xf32>,
    %130 = vector.extract_strided_slice %7 {offsets = [8, 16], sizes = [8, 8], strides = [1, 1]} : vector<16x32xf32> to vector<8x8xf32>
    %131 = arith.truncf %130 : vector<8x8xf32> to vector<8x8xbf16>
    %132 = vector.extract_strided_slice %8 {offsets = [8, 16], sizes = [8, 8], strides = [1, 1]} : vector<16x32xf32> to vector<8x8xf32>
    %133 = arith.truncf %132 : vector<8x8xf32> to vector<8x8xbf16>
    %134 = vector.extract_strided_slice %9 {offsets = [8, 16], sizes = [8, 8], strides = [1, 1]} : vector<16x32xf32> to vector<8x8xf32>
    %135 = arith.truncf %134 : vector<8x8xf32> to vector<8x8xbf16>
    %cst_38 = arith.constant dense<0.000000e+00> : vector<8x8xf32>
    %136 = tpu.matmul %131, %133, %cst_38 {dimension_numbers = #tpu.dot_dimension_numbers<[1], [1], [0], [0], [0, 0, 1, 0], [], []>} : vector<8x8xbf16>, vector<8x8xbf16>, vector<8x8xf32> -> vector<8x8xf32>
    %cst_39 = arith.constant dense<0xFF800000> : vector<8xf32>
    %137 = vector.multi_reduction <maximumf>, %136, %cst_39 [1] : vector<8x8xf32> to vector<8xf32>
    %138 = vector.shape_cast %137 : vector<8xf32> to vector<8x1xf32>
    %139 = vector.broadcast %138 : vector<8x1xf32> to vector<8x8xf32>
    %140 = arith.subf %136, %139 : vector<8x8xf32>
    %141 = math.exp %140 : vector<8x8xf32>
    %cst_40 = arith.constant dense<0.000000e+00> : vector<8xf32>
    %142 = vector.multi_reduction <add>, %141, %cst_40 [1] : vector<8x8xf32> to vector<8xf32>
    %143 = vector.shape_cast %142 : vector<8xf32> to vector<8x1xf32>
    %144 = tpu.reciprocal %143 {approx = true} : vector<8x1xf32> -> vector<8x1xf32>
    %145 = vector.broadcast %144 : vector<8x1xf32> to vector<8x8xf32>
    %146 = arith.mulf %141, %145 : vector<8x8xf32>
    %147 = arith.truncf %146 : vector<8x8xf32> to vector<8x8xbf16>
    %cst_41 = arith.constant dense<0.000000e+00> : vector<8x8xf32>
    %148 = tpu.matmul %147, %135, %cst_41 {dimension_numbers = #tpu.dot_dimension_numbers<[1], [0], [0], [1], [0, 0, 1, 1], [], []>} : vector<8x8xbf16>, vector<8x8xbf16>, vector<8x8xf32> -> vector<8x8xf32>
    %c8_42 = arith.constant 8 : index
    %c16_43 = arith.constant 16 : index
    %149 = vector.load %arg5[%c8_42, %c16_43] : memref<16x32xf32, #tpu.memory_space<vmem>>, vector<8x8xf32>
    tpu.vector_store %arg5[%c8_42, %c16_43], %148 {strides = array<i32>} : memref<16x32xf32, #tpu.memory_space<vmem>>, vector<8x8xf32>,
    %150 = vector.extract_strided_slice %7 {offsets = [8, 24], sizes = [8, 8], strides = [1, 1]} : vector<16x32xf32> to vector<8x8xf32>
    %151 = arith.truncf %150 : vector<8x8xf32> to vector<8x8xbf16>
    %152 = vector.extract_strided_slice %8 {offsets = [8, 24], sizes = [8, 8], strides = [1, 1]} : vector<16x32xf32> to vector<8x8xf32>
    %153 = arith.truncf %152 : vector<8x8xf32> to vector<8x8xbf16>
    %154 = vector.extract_strided_slice %9 {offsets = [8, 24], sizes = [8, 8], strides = [1, 1]} : vector<16x32xf32> to vector<8x8xf32>
    %155 = arith.truncf %154 : vector<8x8xf32> to vector<8x8xbf16>
    %cst_44 = arith.constant dense<0.000000e+00> : vector<8x8xf32>
    %156 = tpu.matmul %151, %153, %cst_44 {dimension_numbers = #tpu.dot_dimension_numbers<[1], [1], [0], [0], [0, 0, 1, 0], [], []>} : vector<8x8xbf16>, vector<8x8xbf16>, vector<8x8xf32> -> vector<8x8xf32>
    %cst_45 = arith.constant dense<0xFF800000> : vector<8xf32>
    %157 = vector.multi_reduction <maximumf>, %156, %cst_45 [1] : vector<8x8xf32> to vector<8xf32>
    %158 = vector.shape_cast %157 : vector<8xf32> to vector<8x1xf32>
    %159 = vector.broadcast %158 : vector<8x1xf32> to vector<8x8xf32>
    %160 = arith.subf %156, %159 : vector<8x8xf32>
    %161 = math.exp %160 : vector<8x8xf32>
    %cst_46 = arith.constant dense<0.000000e+00> : vector<8xf32>
    %162 = vector.multi_reduction <add>, %161, %cst_46 [1] : vector<8x8xf32> to vector<8xf32>
    %163 = vector.shape_cast %162 : vector<8xf32> to vector<8x1xf32>
    %164 = tpu.reciprocal %163 {approx = true} : vector<8x1xf32> -> vector<8x1xf32>
    %165 = vector.broadcast %164 : vector<8x1xf32> to vector<8x8xf32>
    %166 = arith.mulf %161, %165 : vector<8x8xf32>
    %167 = arith.truncf %166 : vector<8x8xf32> to vector<8x8xbf16>
    %cst_47 = arith.constant dense<0.000000e+00> : vector<8x8xf32>
    %168 = tpu.matmul %167, %155, %cst_47 {dimension_numbers = #tpu.dot_dimension_numbers<[1], [0], [0], [1], [0, 0, 1, 1], [], []>} : vector<8x8xbf16>, vector<8x8xbf16>, vector<8x8xf32> -> vector<8x8xf32>
    %c8_48 = arith.constant 8 : index
    %c24_49 = arith.constant 24 : index
    %169 = vector.load %arg5[%c8_48, %c24_49] : memref<16x32xf32, #tpu.memory_space<vmem>>, vector<8x8xf32>
    tpu.vector_store %arg5[%c8_48, %c24_49], %168 {strides = array<i32>} : memref<16x32xf32, #tpu.memory_space<vmem>>, vector<8x8xf32>,
    %c0_50 = arith.constant 0 : index
    %c0_51 = arith.constant 0 : index
    %170 = vector.load %arg5[%c0_50, %c0_51] : memref<16x32xf32, #tpu.memory_space<vmem>>, vector<16x32xf32>
    %171 = arith.truncf %170 : vector<16x32xf32> to vector<16x32xbf16>
    %c0_52 = arith.constant 0 : index
    %c96 = arith.constant 96 : index
    %172 = vector.load %arg1[%c0_52, %c96] : memref<32x192xbf16, #tpu.memory_space<vmem>>, vector<32x32xbf16>
    %cst_53 = arith.constant dense<0.000000e+00> : vector<16x32xf32>
    %173 = tpu.matmul %171, %172, %cst_53 {dimension_numbers = #tpu.dot_dimension_numbers<[1], [0], [0], [1], [0, 0, 1, 1], [], []>} : vector<16x32xbf16>, vector<32x32xbf16>, vector<16x32xf32> -> vector<16x32xf32>
    %c0_54 = arith.constant 0 : index
    %c96_55 = arith.constant 96 : index
    %174 = vector.load %arg3[%c0_54, %c96_55] : memref<1x288xf32, #tpu.memory_space<vmem>>, vector<1x32xf32>
    %175 = vector.broadcast %174 : vector<1x32xf32> to vector<16x32xf32>
    %176 = arith.addf %173, %175 : vector<16x32xf32>
    %c0_56 = arith.constant 0 : index
    %c224 = arith.constant 224 : index
    %177 = vector.load %arg3[%c0_56, %c224] : memref<1x288xf32, #tpu.memory_space<vmem>>, vector<1x32xf32>
    %c0_57 = arith.constant 0 : index
    %c256 = arith.constant 256 : index
    %178 = vector.load %arg3[%c0_57, %c256] : memref<1x288xf32, #tpu.memory_space<vmem>>, vector<1x32xf32>
    %179 = arith.addf %0, %176 : vector<16x32xf32>
    %cst_58 = arith.constant dense<0.000000e+00> : vector<16xf32>
    %180 = vector.multi_reduction <add>, %179, %cst_58 [1] : vector<16x32xf32> to vector<16xf32>
    %181 = vector.shape_cast %180 : vector<16xf32> to vector<16x1xf32>
    %cst_59 = arith.constant 3.200000e+01 : f32
    %182 = vector.broadcast %cst_59 : f32 to vector<16x1xf32>
    %183 = arith.divf %181, %182 : vector<16x1xf32>
    %184 = vector.broadcast %183 : vector<16x1xf32> to vector<16x32xf32>
    %185 = arith.subf %179, %184 : vector<16x32xf32>
    %186 = arith.mulf %185, %185 : vector<16x32xf32>
    %cst_60 = arith.constant dense<0.000000e+00> : vector<16xf32>
    %187 = vector.multi_reduction <add>, %186, %cst_60 [1] : vector<16x32xf32> to vector<16xf32>
    %188 = vector.shape_cast %187 : vector<16xf32> to vector<16x1xf32>
    %cst_61 = arith.constant 3.200000e+01 : f32
    %189 = vector.broadcast %cst_61 : f32 to vector<16x1xf32>
    %190 = arith.divf %188, %189 : vector<16x1xf32>
    %191 = vector.broadcast %183 : vector<16x1xf32> to vector<16x32xf32>
    %192 = arith.subf %179, %191 : vector<16x32xf32>
    %cst_62 = arith.constant 9.99999974E-6 : f32
    %193 = vector.broadcast %cst_62 : f32 to vector<16x1xf32>
    %194 = arith.addf %190, %193 : vector<16x1xf32>
    %195 = math.rsqrt %194 : vector<16x1xf32>
    %196 = vector.broadcast %195 : vector<16x1xf32> to vector<16x32xf32>
    %197 = arith.mulf %192, %196 : vector<16x32xf32>
    %198 = vector.broadcast %177 : vector<1x32xf32> to vector<16x32xf32>
    %199 = arith.mulf %197, %198 : vector<16x32xf32>
    %200 = vector.broadcast %178 : vector<1x32xf32> to vector<16x32xf32>
    %201 = arith.addf %199, %200 : vector<16x32xf32>
    %202 = arith.truncf %201 : vector<16x32xf32> to vector<16x32xbf16>
    %c0_63 = arith.constant 0 : index
    %c128 = arith.constant 128 : index
    %203 = vector.load %arg1[%c0_63, %c128] : memref<32x192xbf16, #tpu.memory_space<vmem>>, vector<32x64xbf16>
    %cst_64 = arith.constant dense<0.000000e+00> : vector<16x64xf32>
    %204 = tpu.matmul %202, %203, %cst_64 {dimension_numbers = #tpu.dot_dimension_numbers<[1], [0], [0], [1], [0, 0, 1, 1], [], []>} : vector<16x32xbf16>, vector<32x64xbf16>, vector<16x64xf32> -> vector<16x64xf32>
    %c0_65 = arith.constant 0 : index
    %c128_66 = arith.constant 128 : index
    %205 = vector.load %arg3[%c0_65, %c128_66] : memref<1x288xf32, #tpu.memory_space<vmem>>, vector<1x64xf32>
    %206 = vector.broadcast %205 : vector<1x64xf32> to vector<16x64xf32>
    %207 = arith.addf %204, %206 : vector<16x64xf32>
    %cst_67 = arith.constant 0.000000e+00 : f32
    %208 = vector.broadcast %cst_67 : f32 to vector<16x64xf32>
    %209 = arith.maximumf %207, %208 : vector<16x64xf32>
    %210 = arith.truncf %209 : vector<16x64xf32> to vector<16x64xbf16>
    %c0_68 = arith.constant 0 : index
    %c0_69 = arith.constant 0 : index
    %211 = vector.load %arg2[%c0_68, %c0_69] : memref<64x32xbf16, #tpu.memory_space<vmem>>, vector<64x32xbf16>
    %cst_70 = arith.constant dense<0.000000e+00> : vector<16x32xf32>
    %212 = tpu.matmul %210, %211, %cst_70 {dimension_numbers = #tpu.dot_dimension_numbers<[1], [0], [0], [1], [0, 0, 1, 1], [], []>} : vector<16x64xbf16>, vector<64x32xbf16>, vector<16x32xf32> -> vector<16x32xf32>
    %c0_71 = arith.constant 0 : index
    %c192 = arith.constant 192 : index
    %213 = vector.load %arg3[%c0_71, %c192] : memref<1x288xf32, #tpu.memory_space<vmem>>, vector<1x32xf32>
    %214 = vector.broadcast %213 : vector<1x32xf32> to vector<16x32xf32>
    %215 = arith.addf %212, %214 : vector<16x32xf32>
    %216 = arith.addf %201, %215 : vector<16x32xf32>
    %cst_72 = arith.constant dense<0.000000e+00> : vector<16xf32>
    %217 = vector.multi_reduction <add>, %216, %cst_72 [1] : vector<16x32xf32> to vector<16xf32>
    %218 = vector.shape_cast %217 : vector<16xf32> to vector<16x1xf32>
    %cst_73 = arith.constant 3.200000e+01 : f32
    %219 = vector.broadcast %cst_73 : f32 to vector<16x1xf32>
    %220 = arith.divf %218, %219 : vector<16x1xf32>
    %221 = vector.broadcast %220 : vector<16x1xf32> to vector<16x32xf32>
    %222 = arith.subf %216, %221 : vector<16x32xf32>
    %223 = arith.mulf %222, %222 : vector<16x32xf32>
    %cst_74 = arith.constant dense<0.000000e+00> : vector<16xf32>
    %224 = vector.multi_reduction <add>, %223, %cst_74 [1] : vector<16x32xf32> to vector<16xf32>
    %225 = vector.shape_cast %224 : vector<16xf32> to vector<16x1xf32>
    %cst_75 = arith.constant 3.200000e+01 : f32
    %226 = vector.broadcast %cst_75 : f32 to vector<16x1xf32>
    %227 = arith.divf %225, %226 : vector<16x1xf32>
    %228 = vector.broadcast %220 : vector<16x1xf32> to vector<16x32xf32>
    %229 = arith.subf %216, %228 : vector<16x32xf32>
    %cst_76 = arith.constant 9.99999974E-6 : f32
    %230 = vector.broadcast %cst_76 : f32 to vector<16x1xf32>
    %231 = arith.addf %227, %230 : vector<16x1xf32>
    %232 = math.rsqrt %231 : vector<16x1xf32>
    %233 = vector.broadcast %232 : vector<16x1xf32> to vector<16x32xf32>
    %234 = arith.mulf %229, %233 : vector<16x32xf32>
    %235 = vector.broadcast %177 : vector<1x32xf32> to vector<16x32xf32>
    %236 = arith.mulf %234, %235 : vector<16x32xf32>
    %237 = vector.broadcast %178 : vector<1x32xf32> to vector<16x32xf32>
    %238 = arith.addf %236, %237 : vector<16x32xf32>
    %c0_77 = arith.constant 0 : index
    %c0_78 = arith.constant 0 : index
    %239 = vector.load %arg4[%c0_77, %c0_78] : memref<16x32xf32, #tpu.memory_space<vmem>>, vector<16x32xf32>
    tpu.vector_store %arg4[%c0_77, %c0_78], %238 {strides = array<i32>} : memref<16x32xf32, #tpu.memory_space<vmem>>, vector<16x32xf32>,
    return
  }
}

</mosaic_0001>

<llo_original>
// kernel: tpu_custom_call.1
$region0: #{tpu_custom_call.1}
  #allocation0 [shape = 'u32[]', space=smem, size = 0x4, offset = 0x4, fixed_abs, tag = 'smem constant byte address 0x4 - core index']
  #allocation1 [shape = 'u32[144,128]{1,0:T(1,128)}', space=vmem, size = 0x12000, scoped, tag = 'internal scratch']
  #allocation2 [shape = 'f32[16,32]{1,0:T(8,128)}', space=vmem, size = 0x2000, scoped, tag = 'scratch operand']
  %s0 = inlined_call_operand.vmem [shape: f32[16,32], index: 0, kind: input, shape index: {}]
  %s1 = inlined_call_operand.vmem [shape: bf16[32,192], index: 1, kind: input, shape index: {}]
  %s2 = inlined_call_operand.vmem [shape: bf16[64,32], index: 2, kind: input, shape index: {}]
  %s3 = inlined_call_operand.vmem [shape: f32[1,288], index: 3, kind: input, shape index: {}]
  %s4 = inlined_call_operand.hbm [shape: f32[16,32], index: 4, kind: output, shape index: {}]
  %s5 = sld [smem:[#allocation0]]
  $region26: #{tpu_custom_call.1} parent=0
    _
  %s7 = ssub.s32 1, %s5
  %s8 = scalar_select 0, %s7, %s5
  $region1: #{tpu_custom_call.1} parent=0
    #allocation3 [shape = 'u8[8192]{0}', space=vmem, size = 0x2000, scoped, tag = 'output window, operand 0, single buffered']
    #allocation4 [shape = 's32[1]{0}', space=sflag, size = 0x4, scoped, tag = 'scoped memory for tpu_custom_call.1']
    %9 = vsyncpa [#allocation4], 0
    // Predicated region
    $region2: #{tpu_custom_call.1} parent=1 // pred_check
      _
    $region3: #{tpu_custom_call.1} parent=1 // pred_check_branch
      %11 = sbr.rel (0) target = $region5
    $region4: #{tpu_custom_call.1} parent=1 // pred_region
      _
    $region5: #{tpu_custom_call.1} parent=1 // pred_fallthru
      _
    // Predicated region
    $region6: #{tpu_custom_call.1} parent=1 // pred_check
      _
    $region7: #{tpu_custom_call.1} parent=1 // pred_check_branch
      %13 = sbr.rel (0) target = $region9
    $region8: #{tpu_custom_call.1} parent=1 // pred_region
      _
    $region9: #{tpu_custom_call.1} parent=1 // pred_fallthru
      _
    // Predicated region
    $region10: #{tpu_custom_call.1} parent=1 // pred_check
      _
    $region11: #{tpu_custom_call.1} parent=1 // pred_check_branch
      %15 = sbr.rel (0) target = $region13
    $region12: #{tpu_custom_call.1} parent=1 // pred_region
      _
    $region13: #{tpu_custom_call.1} parent=1 // pred_fallthru
      _
    // Predicated region
    $region14: #{tpu_custom_call.1} parent=1 // pred_check
      _
    $region15: #{tpu_custom_call.1} parent=1 // pred_check_branch
      %17 = sbr.rel (0) target = $region17
    $region16: #{tpu_custom_call.1} parent=1 // pred_region
      _
    $region17: #{tpu_custom_call.1} parent=1 // pred_fallthru
      _
    %v19 = vld [vmem:[%s0] sm:$0xff]
    %v20 = vld [vmem:[%s0 + $0x8] sm:$0xff]
    %v21 = vpack.c.bf16 %v20, %v19
    %v22 = vld [vmem:[%s1] sm:$0xf]
    %v23 = vld [vmem:[%s1 + $0x8] sm:$0xf]
    %v24 = vld [vmem:[%s1 + $0x10] sm:$0xf]
    %v25 = vld [vmem:[%s1 + $0x18] sm:$0xf]
    %v26 = vld [vmem:[%s3] sm:$0x1]
    %v28 = vlaneseq
    %v29 = vshrl.u32 %v28, 7
    %v30 = vsub.s32 0, %v29
    %v31 = vrot.slane %v26, %v30
    %v37 = vunpack.c.l.b16 %v22
    %v38 = vunpack.c.l.b16 %v23
    %v39 = vunpack.c.l.b16 %v24
    %v40 = vunpack.c.l.b16 %v25
    %v41 = vpack.c.b16 %v38, %v37
    %v42 = vpack.c.b16 %v40, %v39
    %vm45 = vcmask 261120
    %v47 = vsel %vm45, %v21, 0
    %49 = vmatprep.subr.bf16.mxu0 0
    %50 = vmatpush1.bf16.msra.mxu0 %v41
    %51 = vmatprep.subr.bf16.mxu0 0
    %52 = vmatpush1.bf16.msra.mxu0 %v42
    %53 = vmatprep.subr.bf16.mxu0 0
    %54 = vmatpush1.bf16.msra.mxu0 0
    %55 = vmatprep.subr.bf16.mxu0 0
    %56 = vmatpush1.bf16.msra.mxu0 0
    %57 = vmatprep.subr.bf16.mxu0 0
    %58 = vmatpush1.bf16.msra.mxu0 0
    %59 = vmatprep.subr.bf16.mxu0 0
    %60 = vmatpush1.bf16.msra.mxu0 0
    %61 = vmatprep.subr.bf16.mxu0 0
    %62 = vmatpush1.bf16.msra.mxu0 0
    %63 = vmatprep.subr.bf16.mxu0 0
    %64 = vmatpush1.bf16.msra.mxu0 0
    %65 = vmatprep.subr.bf16.mxu0 0
    %66 = vmatpush1.bf16.msra.mxu0 0
    %67 = vmatprep.subr.bf16.mxu0 0
    %68 = vmatpush1.bf16.msra.mxu0 0
    %69 = vmatprep.subr.bf16.mxu0 0
    %70 = vmatpush1.bf16.msra.mxu0 0
    %71 = vmatprep.subr.bf16.mxu0 0
    %72 = vmatpush1.bf16.msra.mxu0 0
    %73 = vmatprep.subr.bf16.mxu0 0
    %74 = vmatpush1.bf16.msra.mxu0 0
    %75 = vmatprep.subr.bf16.mxu0 0
    %76 = vmatpush1.bf16.msra.mxu0 0
    %77 = vmatprep.subr.bf16.mxu0 0
    %78 = vmatpush1.bf16.msra.mxu0 0
    %79 = vmatprep.subr.bf16.mxu0 0
    %80 = vmatpush1.bf16.msra.mxu0 0
    %81 = vmatprep.mubr.bf16.mxu0 0
    %82 = vmatmul.mubr.bf16.gmra.mrb[0].mxu0 %v47
    %v83 = vpop.f32.mrb[0].mxu0
    %v84 = vadd.f32 %v31, %v83
    %v85 = vpop.f32.mrb[0].mxu0
    %v86 = vpop.f32.mrb[0].mxu0
    %v87 = vadd.f32 %v31, %v86
    %v88 = vpop.f32.mrb[0].mxu0
    %89 = vdwg.mxu0
    %v90 = vpack.c.bf16 %v84, %v84
    %92 = vrot.lane.b32.xlu0 %v90, 96
    %v93 = vpop.permute.xlu0 %92
    %vm94 = vcmask 64512
    %v96 = vsel %vm94, %v90, 0
    %v99 = vsel %vm94, %v93, 0
    %101 = vmatprep.subr.bf16.mxu0 0
    %102 = vmatpush1.bf16.xpose.msra.mxu0 %v99
    %103 = vmatprep.subr.bf16.mxu0 0
    %104 = vmatpush1.bf16.xpose.msra.mxu0 0
    %105 = vmatprep.subr.bf16.mxu0 0
    %106 = vmatpush1.bf16.xpose.msra.mxu0 0
    %107 = vmatprep.subr.bf16.mxu0 0
    %108 = vmatpush1.bf16.xpose.msra.mxu0 0
    %109 = vmatprep.subr.bf16.mxu0 0
    %110 = vmatpush1.bf16.xpose.msra.mxu0 0
    %111 = vmatprep.subr.bf16.mxu0 0
    %112 = vmatpush1.bf16.xpose.msra.mxu0 0
    %113 = vmatprep.subr.bf16.mxu0 0
    %114 = vmatpush1.bf16.xpose.msra.mxu0 0
    %115 = vmatprep.subr.bf16.mxu0 0
    %116 = vmatpush1.bf16.xpose.msra.mxu0 0
    %117 = vmatprep.subr.bf16.mxu0 0
    %118 = vmatpush1.bf16.xpose.msra.mxu0 0
    %119 = vmatprep.subr.bf16.mxu0 0
    %120 = vmatpush1.bf16.xpose.msra.mxu0 0
    %121 = vmatprep.subr.bf16.mxu0 0
    %122 = vmatpush1.bf16.xpose.msra.mxu0 0
    %123 = vmatprep.subr.bf16.mxu0 0
    %124 = vmatpush1.bf16.xpose.msra.mxu0 0
    %125 = vmatprep.subr.bf16.mxu0 0
    %126 = vmatpush1.bf16.xpose.msra.mxu0 0
    %127 = vmatprep.subr.bf16.mxu0 0
    %128 = vmatpush1.bf16.xpose.msra.mxu0 0
    %129 = vmatprep.subr.bf16.mxu0 0
    %130 = vmatpush1.bf16.xpose.msra.mxu0 0
    %131 = vmatprep.subr.bf16.mxu0 0
    %132 = vmatpush1.bf16.xpose.msra.mxu0 0
    %133 = vmatprep.mubr.bf16.mxu0 0
    %134 = vmatmul.mubr.bf16.gmra.mrb[0].mxu0 %v96
    %v135 = vpop.f32.mrb[0].mxu0
    %v136 = vadd.f32 0.0, %v135
    %v137 = vpop.f32.mrb[0].mxu0
    %v138 = vpop.f32.mrb[0].mxu0
    %v139 = vpop.f32.mrb[0].mxu0
    %140 = vdwg.mxu0
    %v141 = vsel %vm94, %v136, -inf
    %142 = vmax.xlane.f32.xlu0 %v141
    %v143 = vpop.xlane.xlu0 %142
    %v144 = vsub.f32 %v136, %v143
    %v145 = vmul.f32 %v144, 1.442695
    %v146 = vpow.pop %v145
    %v147 = vsel %vm94, %v146, 0.0
    %148 = vadd.xlane.f32.xlu0 %v147
    %v149 = vpop.xlane.xlu0 %148
    %v150 = vrcp.pop %v149
    %v151 = vmul.f32 %v146, %v150
    %v152 = vpack.c.bf16 %v151, %v151
    %153 = vrot.lane.b32.xlu0 %v90, 64
    %v154 = vpop.permute.xlu0 %153
    %v156 = vsel %vm94, %v152, 0
    %vm158 = vcmask 1043456
    %v160 = vsel %vm158, %v154, 0
    %162 = vmatprep.subr.bf16.mxu0 0
    %163 = vmatpush1.bf16.msra.mxu0 %v160
    %164 = vmatprep.subr.bf16.mxu0 0
    %165 = vmatpush1.bf16.msra.mxu0 0
    %166 = vmatprep.subr.bf16.mxu0 0
    %167 = vmatpush1.bf16.msra.mxu0 0
    %168 = vmatprep.subr.bf16.mxu0 0
    %169 = vmatpush1.bf16.msra.mxu0 0
    %170 = vmatprep.subr.bf16.mxu0 0
    %171 = vmatpush1.bf16.msra.mxu0 0
    %172 = vmatprep.subr.bf16.mxu0 0
    %173 = vmatpush1.bf16.msra.mxu0 0
    %174 = vmatprep.subr.bf16.mxu0 0
    %175 = vmatpush1.bf16.msra.mxu0 0
    %176 = vmatprep.subr.bf16.mxu0 0
    %177 = vmatpush1.bf16.msra.mxu0 0
    %178 = vmatprep.subr.bf16.mxu0 0
    %179 = vmatpush1.bf16.msra.mxu0 0
    %180 = vmatprep.subr.bf16.mxu0 0
    %181 = vmatpush1.bf16.msra.mxu0 0
    %182 = vmatprep.subr.bf16.mxu0 0
    %183 = vmatpush1.bf16.msra.mxu0 0
    %184 = vmatprep.subr.bf16.mxu0 0
    %185 = vmatpush1.bf16.msra.mxu0 0
    %186 = vmatprep.subr.bf16.mxu0 0
    %187 = vmatpush1.bf16.msra.mxu0 0
    %188 = vmatprep.subr.bf16.mxu0 0
    %189 = vmatpush1.bf16.msra.mxu0 0
    %190 = vmatprep.subr.bf16.mxu0 0
    %191 = vmatpush1.bf16.msra.mxu0 0
    %192 = vmatprep.subr.bf16.mxu0 0
    %193 = vmatpush1.bf16.msra.mxu0 0
    %194 = vmatprep.mubr.bf16.mxu0 0
    %195 = vmatmul.mubr.bf16.gmra.mrb[0].mxu0 %v156
    %v196 = vpop.f32.mrb[0].mxu0
    %v197 = vadd.f32 0.0, %v196
    %v198 = vpop.f32.mrb[0].mxu0
    %v199 = vpop.f32.mrb[0].mxu0
    %v200 = vpop.f32.mrb[0].mxu0
    %201 = vdwg.mxu0
    %202 = vst.msk [vmem:[#allocation2] sm:$0xff] %vm94, %v197
    %203 = vrot.lane.b32.xlu0 %v90, 120
    %v204 = vpop.permute.xlu0 %203
    %205 = vrot.lane.b32.xlu0 %v90, 88
    %v206 = vpop.permute.xlu0 %205
    %v208 = vsel %vm94, %v204, 0
    %v211 = vsel %vm94, %v206, 0
    %213 = vmatprep.subr.bf16.mxu0 0
    %214 = vmatpush1.bf16.xpose.msra.mxu0 %v211
    %215 = vmatprep.subr.bf16.mxu0 0
    %216 = vmatpush1.bf16.xpose.msra.mxu0 0
    %217 = vmatprep.subr.bf16.mxu0 0
    %218 = vmatpush1.bf16.xpose.msra.mxu0 0
    %219 = vmatprep.subr.bf16.mxu0 0
    %220 = vmatpush1.bf16.xpose.msra.mxu0 0
    %221 = vmatprep.subr.bf16.mxu0 0
    %222 = vmatpush1.bf16.xpose.msra.mxu0 0
    %223 = vmatprep.subr.bf16.mxu0 0
    %224 = vmatpush1.bf16.xpose.msra.mxu0 0
    %225 = vmatprep.subr.bf16.mxu0 0
    %226 = vmatpush1.bf16.xpose.msra.mxu0 0
    %227 = vmatprep.subr.bf16.mxu0 0
    %228 = vmatpush1.bf16.xpose.msra.mxu0 0
    %229 = vmatprep.subr.bf16.mxu0 0
    %230 = vmatpush1.bf16.xpose.msra.mxu0 0
    %231 = vmatprep.subr.bf16.mxu0 0
    %232 = vmatpush1.bf16.xpose.msra.mxu0 0
    %233 = vmatprep.subr.bf16.mxu0 0
    %234 = vmatpush1.bf16.xpose.msra.mxu0 0
    %235 = vmatprep.subr.bf16.mxu0 0
    %236 = vmatpush1.bf16.xpose.msra.mxu0 0
    %237 = vmatprep.subr.bf16.mxu0 0
    %238 = vmatpush1.bf16.xpose.msra.mxu0 0
    %239 = vmatprep.subr.bf16.mxu0 0
    %240 = vmatpush1.bf16.xpose.msra.mxu0 0
    %241 = vmatprep.subr.bf16.mxu0 0
    %242 = vmatpush1.bf16.xpose.msra.mxu0 0
    %243 = vmatprep.subr.bf16.mxu0 0
    %244 = vmatpush1.bf16.xpose.msra.mxu0 0
    %245 = vmatprep.mubr.bf16.mxu0 0
    %246 = vmatmul.mubr.bf16.gmra.mrb[0].mxu0 %v208
    %v247 = vpop.f32.mrb[0].mxu0
    %v248 = vadd.f32 0.0, %v247
    %v249 = vpop.f32.mrb[0].mxu0
    %v250 = vpop.f32.mrb[0].mxu0
    %v251 = vpop.f32.mrb[0].mxu0
    %252 = vdwg.mxu0
    %v253 = vsel %vm94, %v248, -inf
    %254 = vmax.xlane.f32.xlu0 %v253
    %v255 = vpop.xlane.xlu0 %254
    %v256 = vsub.f32 %v248, %v255
    %v257 = vmul.f32 %v256, 1.442695
    %v258 = vpow.pop %v257
    %v259 = vsel %vm94, %v258, 0.0
    %260 = vadd.xlane.f32.xlu0 %v259
    %v261 = vpop.xlane.xlu0 %260
    %v262 = vrcp.pop %v261
    %v263 = vmul.f32 %v258, %v262
    %v264 = vpack.c.bf16 %v263, %v263
    %265 = vrot.lane.b32.xlu0 %v90, 56
    %v266 = vpop.permute.xlu0 %265
    %v268 = vsel %vm94, %v264, 0
    %v271 = vsel %vm158, %v266, 0
    %273 = vmatprep.subr.bf16.mxu0 0
    %274 = vmatpush1.bf16.msra.mxu0 %v271
    %275 = vmatprep.subr.bf16.mxu0 0
    %276 = vmatpush1.bf16.msra.mxu0 0
    %277 = vmatprep.subr.bf16.mxu0 0
    %278 = vmatpush1.bf16.msra.mxu0 0
    %279 = vmatprep.subr.bf16.mxu0 0
    %280 = vmatpush1.bf16.msra.mxu0 0
    %281 = vmatprep.subr.bf16.mxu0 0
    %282 = vmatpush1.bf16.msra.mxu0 0
    %283 = vmatprep.subr.bf16.mxu0 0
    %284 = vmatpush1.bf16.msra.mxu0 0
    %285 = vmatprep.subr.bf16.mxu0 0
    %286 = vmatpush1.bf16.msra.mxu0 0
    %287 = vmatprep.subr.bf16.mxu0 0
    %288 = vmatpush1.bf16.msra.mxu0 0
    %289 = vmatprep.subr.bf16.mxu0 0
    %290 = vmatpush1.bf16.msra.mxu0 0
    %291 = vmatprep.subr.bf16.mxu0 0
    %292 = vmatpush1.bf16.msra.mxu0 0
    %293 = vmatprep.subr.bf16.mxu0 0
    %294 = vmatpush1.bf16.msra.mxu0 0
    %295 = vmatprep.subr.bf16.mxu0 0
    %296 = vmatpush1.bf16.msra.mxu0 0
    %297 = vmatprep.subr.bf16.mxu0 0
    %298 = vmatpush1.bf16.msra.mxu0 0
    %299 = vmatprep.subr.bf16.mxu0 0
    %300 = vmatpush1.bf16.msra.mxu0 0
    %301 = vmatprep.subr.bf16.mxu0 0
    %302 = vmatpush1.bf16.msra.mxu0 0
    %303 = vmatprep.subr.bf16.mxu0 0
    %304 = vmatpush1.bf16.msra.mxu0 0
    %305 = vmatprep.mubr.bf16.mxu0 0
    %306 = vmatmul.mubr.bf16.gmra.mrb[0].mxu0 %v268
    %v307 = vpop.f32.mrb[0].mxu0
    %v308 = vadd.f32 0.0, %v307
    %v309 = vpop.f32.mrb[0].mxu0
    %v310 = vpop.f32.mrb[0].mxu0
    %v311 = vpop.f32.mrb[0].mxu0
    %312 = vdwg.mxu0
    %314 = vrot.lane.b32.xlu0 %v308, 8
    %v315 = vpop.permute.xlu0 %314
    %vm317 = vcmask 130112
    %318 = vst.msk [vmem:[#allocation2] sm:$0xff] %vm317, %v315
    %319 = vrot.lane.b32.xlu0 %v90, 112
    %v320 = vpop.permute.xlu0 %319
    %321 = vrot.lane.b32.xlu0 %v90, 80
    %v322 = vpop.permute.xlu0 %321
    %v324 = vsel %vm94, %v320, 0
    %v327 = vsel %vm94, %v322, 0
    %329 = vmatprep.subr.bf16.mxu0 0
    %330 = vmatpush1.bf16.xpose.msra.mxu0 %v327
    %331 = vmatprep.subr.bf16.mxu0 0
    %332 = vmatpush1.bf16.xpose.msra.mxu0 0
    %333 = vmatprep.subr.bf16.mxu0 0
    %334 = vmatpush1.bf16.xpose.msra.mxu0 0
    %335 = vmatprep.subr.bf16.mxu0 0
    %336 = vmatpush1.bf16.xpose.msra.mxu0 0
    %337 = vmatprep.subr.bf16.mxu0 0
    %338 = vmatpush1.bf16.xpose.msra.mxu0 0
    %339 = vmatprep.subr.bf16.mxu0 0
    %340 = vmatpush1.bf16.xpose.msra.mxu0 0
    %341 = vmatprep.subr.bf16.mxu0 0
    %342 = vmatpush1.bf16.xpose.msra.mxu0 0
    %343 = vmatprep.subr.bf16.mxu0 0
    %344 = vmatpush1.bf16.xpose.msra.mxu0 0
    %345 = vmatprep.subr.bf16.mxu0 0
    %346 = vmatpush1.bf16.xpose.msra.mxu0 0
    %347 = vmatprep.subr.bf16.mxu0 0
    %348 = vmatpush1.bf16.xpose.msra.mxu0 0
    %349 = vmatprep.subr.bf16.mxu0 0
    %350 = vmatpush1.bf16.xpose.msra.mxu0 0
    %351 = vmatprep.subr.bf16.mxu0 0
    %352 = vmatpush1.bf16.xpose.msra.mxu0 0
    %353 = vmatprep.subr.bf16.mxu0 0
    %354 = vmatpush1.bf16.xpose.msra.mxu0 0
    %355 = vmatprep.subr.bf16.mxu0 0
    %356 = vmatpush1.bf16.xpose.msra.mxu0 0
    %357 = vmatprep.subr.bf16.mxu0 0
    %358 = vmatpush1.bf16.xpose.msra.mxu0 0
    %359 = vmatprep.subr.bf16.mxu0 0
    %360 = vmatpush1.bf16.xpose.msra.mxu0 0
    %361 = vmatprep.mubr.bf16.mxu0 0
    %362 = vmatmul.mubr.bf16.gmra.mrb[0].mxu0 %v324
    %v363 = vpop.f32.mrb[0].mxu0
    %v364 = vadd.f32 0.0, %v363
    %v365 = vpop.f32.mrb[0].mxu0
    %v366 = vpop.f32.mrb[0].mxu0
    %v367 = vpop.f32.mrb[0].mxu0
    %368 = vdwg.mxu0
    %v369 = vsel %vm94, %v364, -inf
    %370 = vmax.xlane.f32.xlu0 %v369
    %v371 = vpop.xlane.xlu0 %370
    %v372 = vsub.f32 %v364, %v371
    %v373 = vmul.f32 %v372, 1.442695
    %v374 = vpow.pop %v373
    %v375 = vsel %vm94, %v374, 0.0
    %376 = vadd.xlane.f32.xlu0 %v375
    %v377 = vpop.xlane.xlu0 %376
    %v378 = vrcp.pop %v377
    %v379 = vmul.f32 %v374, %v378
    %v380 = vpack.c.bf16 %v379, %v379
    %381 = vrot.lane.b32.xlu0 %v90, 48
    %v382 = vpop.permute.xlu0 %381
    %v384 = vsel %vm94, %v380, 0
    %v387 = vsel %vm158, %v382, 0
    %389 = vmatprep.subr.bf16.mxu0 0
    %390 = vmatpush1.bf16.msra.mxu0 %v387
    %391 = vmatprep.subr.bf16.mxu0 0
    %392 = vmatpush1.bf16.msra.mxu0 0
    %393 = vmatprep.subr.bf16.mxu0 0
    %394 = vmatpush1.bf16.msra.mxu0 0
    %395 = vmatprep.subr.bf16.mxu0 0
    %396 = vmatpush1.bf16.msra.mxu0 0
    %397 = vmatprep.subr.bf16.mxu0 0
    %398 = vmatpush1.bf16.msra.mxu0 0
    %399 = vmatprep.subr.bf16.mxu0 0
    %400 = vmatpush1.bf16.msra.mxu0 0
    %401 = vmatprep.subr.bf16.mxu0 0
    %402 = vmatpush1.bf16.msra.mxu0 0
    %403 = vmatprep.subr.bf16.mxu0 0
    %404 = vmatpush1.bf16.msra.mxu0 0
    %405 = vmatprep.subr.bf16.mxu0 0
    %406 = vmatpush1.bf16.msra.mxu0 0
    %407 = vmatprep.subr.bf16.mxu0 0
    %408 = vmatpush1.bf16.msra.mxu0 0
    %409 = vmatprep.subr.bf16.mxu0 0
    %410 = vmatpush1.bf16.msra.mxu0 0
    %411 = vmatprep.subr.bf16.mxu0 0
    %412 = vmatpush1.bf16.msra.mxu0 0
    %413 = vmatprep.subr.bf16.mxu0 0
    %414 = vmatpush1.bf16.msra.mxu0 0
    %415 = vmatprep.subr.bf16.mxu0 0
    %416 = vmatpush1.bf16.msra.mxu0 0
    %417 = vmatprep.subr.bf16.mxu0 0
    %418 = vmatpush1.bf16.msra.mxu0 0
    %419 = vmatprep.subr.bf16.mxu0 0
    %420 = vmatpush1.bf16.msra.mxu0 0
    %421 = vmatprep.mubr.bf16.mxu0 0
    %422 = vmatmul.mubr.bf16.gmra.mrb[0].mxu0 %v384
    %v423 = vpop.f32.mrb[0].mxu0
    %v424 = vadd.f32 0.0, %v423
    %v425 = vpop.f32.mrb[0].mxu0
    %v426 = vpop.f32.mrb[0].mxu0
    %v427 = vpop.f32.mrb[0].mxu0
    %428 = vdwg.mxu0
    %430 = vrot.lane.b32.xlu0 %v424, 16
    %v431 = vpop.permute.xlu0 %430
    %vm433 = vcmask 195712
    %434 = vst.msk [vmem:[#allocation2] sm:$0xff] %vm433, %v431
    %435 = vrot.lane.b32.xlu0 %v90, 104
    %v436 = vpop.permute.xlu0 %435
    %437 = vrot.lane.b32.xlu0 %v90, 72
    %v438 = vpop.permute.xlu0 %437
    %v440 = vsel %vm94, %v436, 0
    %v443 = vsel %vm94, %v438, 0
    %445 = vmatprep.subr.bf16.mxu0 0
    %446 = vmatpush1.bf16.xpose.msra.mxu0 %v443
    %447 = vmatprep.subr.bf16.mxu0 0
    %448 = vmatpush1.bf16.xpose.msra.mxu0 0
    %449 = vmatprep.subr.bf16.mxu0 0
    %450 = vmatpush1.bf16.xpose.msra.mxu0 0
    %451 = vmatprep.subr.bf16.mxu0 0
    %452 = vmatpush1.bf16.xpose.msra.mxu0 0
    %453 = vmatprep.subr.bf16.mxu0 0
    %454 = vmatpush1.bf16.xpose.msra.mxu0 0
    %455 = vmatprep.subr.bf16.mxu0 0
    %456 = vmatpush1.bf16.xpose.msra.mxu0 0
    %457 = vmatprep.subr.bf16.mxu0 0
    %458 = vmatpush1.bf16.xpose.msra.mxu0 0
    %459 = vmatprep.subr.bf16.mxu0 0
    %460 = vmatpush1.bf16.xpose.msra.mxu0 0
    %461 = vmatprep.subr.bf16.mxu0 0
    %462 = vmatpush1.bf16.xpose.msra.mxu0 0
    %463 = vmatprep.subr.bf16.mxu0 0
    %464 = vmatpush1.bf16.xpose.msra.mxu0 0
    %465 = vmatprep.subr.bf16.mxu0 0
    %466 = vmatpush1.bf16.xpose.msra.mxu0 0
    %467 = vmatprep.subr.bf16.mxu0 0
    %468 = vmatpush1.bf16.xpose.msra.mxu0 0
    %469 = vmatprep.subr.bf16.mxu0 0
    %470 = vmatpush1.bf16.xpose.msra.mxu0 0
    %471 = vmatprep.subr.bf16.mxu0 0
    %472 = vmatpush1.bf16.xpose.msra.mxu0 0
    %473 = vmatprep.subr.bf16.mxu0 0
    %474 = vmatpush1.bf16.xpose.msra.mxu0 0
    %475 = vmatprep.subr.bf16.mxu0 0
    %476 = vmatpush1.bf16.xpose.msra.mxu0 0
    %477 = vmatprep.mubr.bf16.mxu0 0
    %478 = vmatmul.mubr.bf16.gmra.mrb[0].mxu0 %v440
    %v479 = vpop.f32.mrb[0].mxu0
    %v480 = vadd.f32 0.0, %v479
    %v481 = vpop.f32.mrb[0].mxu0
    %v482 = vpop.f32.mrb[0].mxu0
    %v483 = vpop.f32.mrb[0].mxu0
    %484 = vdwg.mxu0
    %v485 = vsel %vm94, %v480, -inf
    %486 = vmax.xlane.f32.xlu0 %v485
    %v487 = vpop.xlane.xlu0 %486
    %v488 = vsub.f32 %v480, %v487
    %v489 = vmul.f32 %v488, 1.442695
    %v490 = vpow.pop %v489
    %v491 = vsel %vm94, %v490, 0.0
    %492 = vadd.xlane.f32.xlu0 %v491
    %v493 = vpop.xlane.xlu0 %492
    %v494 = vrcp.pop %v493
    %v495 = vmul.f32 %v490, %v494
    %v496 = vpack.c.bf16 %v495, %v495
    %497 = vrot.lane.b32.xlu0 %v90, 40
    %v498 = vpop.permute.xlu0 %497
    %v500 = vsel %vm94, %v496, 0
    %v503 = vsel %vm158, %v498, 0
    %505 = vmatprep.subr.bf16.mxu0 0
    %506 = vmatpush1.bf16.msra.mxu0 %v503
    %507 = vmatprep.subr.bf16.mxu0 0
    %508 = vmatpush1.bf16.msra.mxu0 0
    %509 = vmatprep.subr.bf16.mxu0 0
    %510 = vmatpush1.bf16.msra.mxu0 0
    %511 = vmatprep.subr.bf16.mxu0 0
    %512 = vmatpush1.bf16.msra.mxu0 0
    %513 = vmatprep.subr.bf16.mxu0 0
    %514 = vmatpush1.bf16.msra.mxu0 0
    %515 = vmatprep.subr.bf16.mxu0 0
    %516 = vmatpush1.bf16.msra.mxu0 0
    %517 = vmatprep.subr.bf16.mxu0 0
    %518 = vmatpush1.bf16.msra.mxu0 0
    %519 = vmatprep.subr.bf16.mxu0 0
    %520 = vmatpush1.bf16.msra.mxu0 0
    %521 = vmatprep.subr.bf16.mxu0 0
    %522 = vmatpush1.bf16.msra.mxu0 0
    %523 = vmatprep.subr.bf16.mxu0 0
    %524 = vmatpush1.bf16.msra.mxu0 0
    %525 = vmatprep.subr.bf16.mxu0 0
    %526 = vmatpush1.bf16.msra.mxu0 0
    %527 = vmatprep.subr.bf16.mxu0 0
    %528 = vmatpush1.bf16.msra.mxu0 0
    %529 = vmatprep.subr.bf16.mxu0 0
    %530 = vmatpush1.bf16.msra.mxu0 0
    %531 = vmatprep.subr.bf16.mxu0 0
    %532 = vmatpush1.bf16.msra.mxu0 0
    %533 = vmatprep.subr.bf16.mxu0 0
    %534 = vmatpush1.bf16.msra.mxu0 0
    %535 = vmatprep.subr.bf16.mxu0 0
    %536 = vmatpush1.bf16.msra.mxu0 0
    %537 = vmatprep.mubr.bf16.mxu0 0
    %538 = vmatmul.mubr.bf16.gmra.mrb[0].mxu0 %v500
    %v539 = vpop.f32.mrb[0].mxu0
    %v540 = vadd.f32 0.0, %v539
    %v541 = vpop.f32.mrb[0].mxu0
    %v542 = vpop.f32.mrb[0].mxu0
    %v543 = vpop.f32.mrb[0].mxu0
    %544 = vdwg.mxu0
    %546 = vrot.lane.b32.xlu0 %v540, 24
    %v547 = vpop.permute.xlu0 %546
    %vm549 = vcmask 261312
    %550 = vst.msk [vmem:[#allocation2] sm:$0xff] %vm549, %v547
    %v551 = vpack.c.bf16 %v87, %v87
    %553 = vrot.lane.b32.xlu0 %v551, 96
    %v554 = vpop.permute.xlu0 %553
    %v556 = vsel %vm94, %v551, 0
    %v559 = vsel %vm94, %v554, 0
    %561 = vmatprep.subr.bf16.mxu0 0
    %562 = vmatpush1.bf16.xpose.msra.mxu0 %v559
    %563 = vmatprep.subr.bf16.mxu0 0
    %564 = vmatpush1.bf16.xpose.msra.mxu0 0
    %565 = vmatprep.subr.bf16.mxu0 0
    %566 = vmatpush1.bf16.xpose.msra.mxu0 0
    %567 = vmatprep.subr.bf16.mxu0 0
    %568 = vmatpush1.bf16.xpose.msra.mxu0 0
    %569 = vmatprep.subr.bf16.mxu0 0
    %570 = vmatpush1.bf16.xpose.msra.mxu0 0
    %571 = vmatprep.subr.bf16.mxu0 0
    %572 = vmatpush1.bf16.xpose.msra.mxu0 0
    %573 = vmatprep.subr.bf16.mxu0 0
    %574 = vmatpush1.bf16.xpose.msra.mxu0 0
    %575 = vmatprep.subr.bf16.mxu0 0
    %576 = vmatpush1.bf16.xpose.msra.mxu0 0
    %577 = vmatprep.subr.bf16.mxu0 0
    %578 = vmatpush1.bf16.xpose.msra.mxu0 0
    %579 = vmatprep.subr.bf16.mxu0 0
    %580 = vmatpush1.bf16.xpose.msra.mxu0 0
    %581 = vmatprep.subr.bf16.mxu0 0
    %582 = vmatpush1.bf16.xpose.msra.mxu0 0
    %583 = vmatprep.subr.bf16.mxu0 0
    %584 = vmatpush1.bf16.xpose.msra.mxu0 0
    %585 = vmatprep.subr.bf16.mxu0 0
    %586 = vmatpush1.bf16.xpose.msra.mxu0 0
    %587 = vmatprep.subr.bf16.mxu0 0
    %588 = vmatpush1.bf16.xpose.msra.mxu0 0
    %589 = vmatprep.subr.bf16.mxu0 0
    %590 = vmatpush1.bf16.xpose.msra.mxu0 0
    %591 = vmatprep.subr.bf16.mxu0 0
    %592 = vmatpush1.bf16.xpose.msra.mxu0 0
    %593 = vmatprep.mubr.bf16.mxu0 0
    %594 = vmatmul.mubr.bf16.gmra.mrb[0].mxu0 %v556
    %v595 = vpop.f32.mrb[0].mxu0
    %v596 = vadd.f32 0.0, %v595
    %v597 = vpop.f32.mrb[0].mxu0
    %v598 = vpop.f32.mrb[0].mxu0
    %v599 = vpop.f32.mrb[0].mxu0
    %600 = vdwg.mxu0
    %v601 = vsel %vm94, %v596, -inf
    %602 = vmax.xlane.f32.xlu0 %v601
    %v603 = vpop.xlane.xlu0 %602
    %v604 = vsub.f32 %v596, %v603
    %v605 = vmul.f32 %v604, 1.442695
    %v606 = vpow.pop %v605
    %v607 = vsel %vm94, %v606, 0.0
    %608 = vadd.xlane.f32.xlu0 %v607
    %v609 = vpop.xlane.xlu0 %608
    %v610 = vrcp.pop %v609
    %v611 = vmul.f32 %v606, %v610
    %v612 = vpack.c.bf16 %v611, %v611
    %613 = vrot.lane.b32.xlu0 %v551, 64
    %v614 = vpop.permute.xlu0 %613
    %v616 = vsel %vm94, %v612, 0
    %v619 = vsel %vm158, %v614, 0
    %621 = vmatprep.subr.bf16.mxu0 0
    %622 = vmatpush1.bf16.msra.mxu0 %v619
    %623 = vmatprep.subr.bf16.mxu0 0
    %624 = vmatpush1.bf16.msra.mxu0 0
    %625 = vmatprep.subr.bf16.mxu0 0
    %626 = vmatpush1.bf16.msra.mxu0 0
    %627 = vmatprep.subr.bf16.mxu0 0
    %628 = vmatpush1.bf16.msra.mxu0 0
    %629 = vmatprep.subr.bf16.mxu0 0
    %630 = vmatpush1.bf16.msra.mxu0 0
    %631 = vmatprep.subr.bf16.mxu0 0
    %632 = vmatpush1.bf16.msra.mxu0 0
    %633 = vmatprep.subr.bf16.mxu0 0
    %634 = vmatpush1.bf16.msra.mxu0 0
    %635 = vmatprep.subr.bf16.mxu0 0
    %636 = vmatpush1.bf16.msra.mxu0 0
    %637 = vmatprep.subr.bf16.mxu0 0
    %638 = vmatpush1.bf16.msra.mxu0 0
    %639 = vmatprep.subr.bf16.mxu0 0
    %640 = vmatpush1.bf16.msra.mxu0 0
    %641 = vmatprep.subr.bf16.mxu0 0
    %642 = vmatpush1.bf16.msra.mxu0 0
    %643 = vmatprep.subr.bf16.mxu0 0
    %644 = vmatpush1.bf16.msra.mxu0 0
    %645 = vmatprep.subr.bf16.mxu0 0
    %646 = vmatpush1.bf16.msra.mxu0 0
    %647 = vmatprep.subr.bf16.mxu0 0
    %648 = vmatpush1.bf16.msra.mxu0 0
    %649 = vmatprep.subr.bf16.mxu0 0
    %650 = vmatpush1.bf16.msra.mxu0 0
    %651 = vmatprep.subr.bf16.mxu0 0
    %652 = vmatpush1.bf16.msra.mxu0 0
    %653 = vmatprep.mubr.bf16.mxu0 0
    %654 = vmatmul.mubr.bf16.gmra.mrb[0].mxu0 %v616
    %v655 = vpop.f32.mrb[0].mxu0
    %v656 = vadd.f32 0.0, %v655
    %v657 = vpop.f32.mrb[0].mxu0
    %v658 = vpop.f32.mrb[0].mxu0
    %v659 = vpop.f32.mrb[0].mxu0
    %660 = vdwg.mxu0
    %661 = vst.msk [vmem:[#allocation2 + $0x8] sm:$0xff] %vm94, %v656
    %662 = vrot.lane.b32.xlu0 %v551, 120
    %v663 = vpop.permute.xlu0 %662
    %664 = vrot.lane.b32.xlu0 %v551, 88
    %v665 = vpop.permute.xlu0 %664
    %v667 = vsel %vm94, %v663, 0
    %v670 = vsel %vm94, %v665, 0
    %672 = vmatprep.subr.bf16.mxu0 0
    %673 = vmatpush1.bf16.xpose.msra.mxu0 %v670
    %674 = vmatprep.subr.bf16.mxu0 0
    %675 = vmatpush1.bf16.xpose.msra.mxu0 0
    %676 = vmatprep.subr.bf16.mxu0 0
    %677 = vmatpush1.bf16.xpose.msra.mxu0 0
    %678 = vmatprep.subr.bf16.mxu0 0
    %679 = vmatpush1.bf16.xpose.msra.mxu0 0
    %680 = vmatprep.subr.bf16.mxu0 0
    %681 = vmatpush1.bf16.xpose.msra.mxu0 0
    %682 = vmatprep.subr.bf16.mxu0 0
    %683 = vmatpush1.bf16.xpose.msra.mxu0 0
    %684 = vmatprep.subr.bf16.mxu0 0
    %685 = vmatpush1.bf16.xpose.msra.mxu0 0
    %686 = vmatprep.subr.bf16.mxu0 0
    %687 = vmatpush1.bf16.xpose.msra.mxu0 0
    %688 = vmatprep.subr.bf16.mxu0 0
    %689 = vmatpush1.bf16.xpose.msra.mxu0 0
    %690 = vmatprep.subr.bf16.mxu0 0
    %691 = vmatpush1.bf16.xpose.msra.mxu0 0
    %692 = vmatprep.subr.bf16.mxu0 0
    %693 = vmatpush1.bf16.xpose.msra.mxu0 0
    %694 = vmatprep.subr.bf16.mxu0 0
    %695 = vmatpush1.bf16.xpose.msra.mxu0 0
    %696 = vmatprep.subr.bf16.mxu0 0
    %697 = vmatpush1.bf16.xpose.msra.mxu0 0
    %698 = vmatprep.subr.bf16.mxu0 0
    %699 = vmatpush1.bf16.xpose.msra.mxu0 0
    %700 = vmatprep.subr.bf16.mxu0 0
    %701 = vmatpush1.bf16.xpose.msra.mxu0 0
    %702 = vmatprep.subr.bf16.mxu0 0
    %703 = vmatpush1.bf16.xpose.msra.mxu0 0
    %704 = vmatprep.mubr.bf16.mxu0 0
    %705 = vmatmul.mubr.bf16.gmra.mrb[0].mxu0 %v667
    %v706 = vpop.f32.mrb[0].mxu0
    %v707 = vadd.f32 0.0, %v706
    %v708 = vpop.f32.mrb[0].mxu0
    %v709 = vpop.f32.mrb[0].mxu0
    %v710 = vpop.f32.mrb[0].mxu0
    %711 = vdwg.mxu0
    %v712 = vsel %vm94, %v707, -inf
    %713 = vmax.xlane.f32.xlu0 %v712
    %v714 = vpop.xlane.xlu0 %713
    %v715 = vsub.f32 %v707, %v714
    %v716 = vmul.f32 %v715, 1.442695
    %v717 = vpow.pop %v716
    %v718 = vsel %vm94, %v717, 0.0
    %719 = vadd.xlane.f32.xlu0 %v718
    %v720 = vpop.xlane.xlu0 %719
    %v721 = vrcp.pop %v720
    %v722 = vmul.f32 %v717, %v721
    %v723 = vpack.c.bf16 %v722, %v722
    %724 = vrot.lane.b32.xlu0 %v551, 56
    %v725 = vpop.permute.xlu0 %724
    %v727 = vsel %vm94, %v723, 0
    %v730 = vsel %vm158, %v725, 0
    %732 = vmatprep.subr.bf16.mxu0 0
    %733 = vmatpush1.bf16.msra.mxu0 %v730
    %734 = vmatprep.subr.bf16.mxu0 0
    %735 = vmatpush1.bf16.msra.mxu0 0
    %736 = vmatprep.subr.bf16.mxu0 0
    %737 = vmatpush1.bf16.msra.mxu0 0
    %738 = vmatprep.subr.bf16.mxu0 0
    %739 = vmatpush1.bf16.msra.mxu0 0
    %740 = vmatprep.subr.bf16.mxu0 0
    %741 = vmatpush1.bf16.msra.mxu0 0
    %742 = vmatprep.subr.bf16.mxu0 0
    %743 = vmatpush1.bf16.msra.mxu0 0
    %744 = vmatprep.subr.bf16.mxu0 0
    %745 = vmatpush1.bf16.msra.mxu0 0
    %746 = vmatprep.subr.bf16.mxu0 0
    %747 = vmatpush1.bf16.msra.mxu0 0
    %748 = vmatprep.subr.bf16.mxu0 0
    %749 = vmatpush1.bf16.msra.mxu0 0
    %750 = vmatprep.subr.bf16.mxu0 0
    %751 = vmatpush1.bf16.msra.mxu0 0
    %752 = vmatprep.subr.bf16.mxu0 0
    %753 = vmatpush1.bf16.msra.mxu0 0
    %754 = vmatprep.subr.bf16.mxu0 0
    %755 = vmatpush1.bf16.msra.mxu0 0
    %756 = vmatprep.subr.bf16.mxu0 0
    %757 = vmatpush1.bf16.msra.mxu0 0
    %758 = vmatprep.subr.bf16.mxu0 0
    %759 = vmatpush1.bf16.msra.mxu0 0
    %760 = vmatprep.subr.bf16.mxu0 0
    %761 = vmatpush1.bf16.msra.mxu0 0
    %762 = vmatprep.subr.bf16.mxu0 0
    %763 = vmatpush1.bf16.msra.mxu0 0
    %764 = vmatprep.mubr.bf16.mxu0 0
    %765 = vmatmul.mubr.bf16.gmra.mrb[0].mxu0 %v727
    %v766 = vpop.f32.mrb[0].mxu0
    %v767 = vadd.f32 0.0, %v766
    %v768 = vpop.f32.mrb[0].mxu0
    %v769 = vpop.f32.mrb[0].mxu0
    %v770 = vpop.f32.mrb[0].mxu0
    %771 = vdwg.mxu0
    %773 = vrot.lane.b32.xlu0 %v767, 8
    %v774 = vpop.permute.xlu0 %773
    %776 = vst.msk [vmem:[#allocation2 + $0x8] sm:$0xff] %vm317, %v774
    %777 = vrot.lane.b32.xlu0 %v551, 112
    %v778 = vpop.permute.xlu0 %777
    %779 = vrot.lane.b32.xlu0 %v551, 80
    %v780 = vpop.permute.xlu0 %779
    %v782 = vsel %vm94, %v778, 0
    %v785 = vsel %vm94, %v780, 0
    %787 = vmatprep.subr.bf16.mxu0 0
    %788 = vmatpush1.bf16.xpose.msra.mxu0 %v785
    %789 = vmatprep.subr.bf16.mxu0 0
    %790 = vmatpush1.bf16.xpose.msra.mxu0 0
    %791 = vmatprep.subr.bf16.mxu0 0
    %792 = vmatpush1.bf16.xpose.msra.mxu0 0
    %793 = vmatprep.subr.bf16.mxu0 0
    %794 = vmatpush1.bf16.xpose.msra.mxu0 0
    %795 = vmatprep.subr.bf16.mxu0 0
    %796 = vmatpush1.bf16.xpose.msra.mxu0 0
    %797 = vmatprep.subr.bf16.mxu0 0
    %798 = vmatpush1.bf16.xpose.msra.mxu0 0
    %799 = vmatprep.subr.bf16.mxu0 0
    %800 = vmatpush1.bf16.xpose.msra.mxu0 0
    %801 = vmatprep.subr.bf16.mxu0 0
    %802 = vmatpush1.bf16.xpose.msra.mxu0 0
    %803 = vmatprep.subr.bf16.mxu0 0
    %804 = vmatpush1.bf16.xpose.msra.mxu0 0
    %805 = vmatprep.subr.bf16.mxu0 0
    %806 = vmatpush1.bf16.xpose.msra.mxu0 0
    %807 = vmatprep.subr.bf16.mxu0 0
    %808 = vmatpush1.bf16.xpose.msra.mxu0 0
    %809 = vmatprep.subr.bf16.mxu0 0
    %810 = vmatpush1.bf16.xpose.msra.mxu0 0
    %811 = vmatprep.subr.bf16.mxu0 0
    %812 = vmatpush1.bf16.xpose.msra.mxu0 0
    %813 = vmatprep.subr.bf16.mxu0 0
    %814 = vmatpush1.bf16.xpose.msra.mxu0 0
    %815 = vmatprep.subr.bf16.mxu0 0
    %816 = vmatpush1.bf16.xpose.msra.mxu0 0
    %817 = vmatprep.subr.bf16.mxu0 0
    %818 = vmatpush1.bf16.xpose.msra.mxu0 0
    %819 = vmatprep.mubr.bf16.mxu0 0
    %820 = vmatmul.mubr.bf16.gmra.mrb[0].mxu0 %v782
    %v821 = vpop.f32.mrb[0].mxu0
    %v822 = vadd.f32 0.0, %v821
    %v823 = vpop.f32.mrb[0].mxu0
    %v824 = vpop.f32.mrb[0].mxu0
    %v825 = vpop.f32.mrb[0].mxu0
    %826 = vdwg.mxu0
    %v827 = vsel %vm94, %v822, -inf
    %828 = vmax.xlane.f32.xlu0 %v827
    %v829 = vpop.xlane.xlu0 %828
    %v830 = vsub.f32 %v822, %v829
    %v831 = vmul.f32 %v830, 1.442695
    %v832 = vpow.pop %v831
    %v833 = vsel %vm94, %v832, 0.0
    %834 = vadd.xlane.f32.xlu0 %v833
    %v835 = vpop.xlane.xlu0 %834
    %v836 = vrcp.pop %v835
    %v837 = vmul.f32 %v832, %v836
    %v838 = vpack.c.bf16 %v837, %v837
    %839 = vrot.lane.b32.xlu0 %v551, 48
    %v840 = vpop.permute.xlu0 %839
    %v842 = vsel %vm94, %v838, 0
    %v845 = vsel %vm158, %v840, 0
    %847 = vmatprep.subr.bf16.mxu0 0
    %848 = vmatpush1.bf16.msra.mxu0 %v845
    %849 = vmatprep.subr.bf16.mxu0 0
    %850 = vmatpush1.bf16.msra.mxu0 0
    %851 = vmatprep.subr.bf16.mxu0 0
    %852 = vmatpush1.bf16.msra.mxu0 0
    %853 = vmatprep.subr.bf16.mxu0 0
    %854 = vmatpush1.bf16.msra.mxu0 0
    %855 = vmatprep.subr.bf16.mxu0 0
    %856 = vmatpush1.bf16.msra.mxu0 0
    %857 = vmatprep.subr.bf16.mxu0 0
    %858 = vmatpush1.bf16.msra.mxu0 0
    %859 = vmatprep.subr.bf16.mxu0 0
    %860 = vmatpush1.bf16.msra.mxu0 0
    %861 = vmatprep.subr.bf16.mxu0 0
    %862 = vmatpush1.bf16.msra.mxu0 0
    %863 = vmatprep.subr.bf16.mxu0 0
    %864 = vmatpush1.bf16.msra.mxu0 0
    %865 = vmatprep.subr.bf16.mxu0 0
    %866 = vmatpush1.bf16.msra.mxu0 0
    %867 = vmatprep.subr.bf16.mxu0 0
    %868 = vmatpush1.bf16.msra.mxu0 0
    %869 = vmatprep.subr.bf16.mxu0 0
    %870 = vmatpush1.bf16.msra.mxu0 0
    %871 = vmatprep.subr.bf16.mxu0 0
    %872 = vmatpush1.bf16.msra.mxu0 0
    %873 = vmatprep.subr.bf16.mxu0 0
    %874 = vmatpush1.bf16.msra.mxu0 0
    %875 = vmatprep.subr.bf16.mxu0 0
    %876 = vmatpush1.bf16.msra.mxu0 0
    %877 = vmatprep.subr.bf16.mxu0 0
    %878 = vmatpush1.bf16.msra.mxu0 0
    %879 = vmatprep.mubr.bf16.mxu0 0
    %880 = vmatmul.mubr.bf16.gmra.mrb[0].mxu0 %v842
    %v881 = vpop.f32.mrb[0].mxu0
    %v882 = vadd.f32 0.0, %v881
    %v883 = vpop.f32.mrb[0].mxu0
    %v884 = vpop.f32.mrb[0].mxu0
    %v885 = vpop.f32.mrb[0].mxu0
    %886 = vdwg.mxu0
    %888 = vrot.lane.b32.xlu0 %v882, 16
    %v889 = vpop.permute.xlu0 %888
    %891 = vst.msk [vmem:[#allocation2 + $0x8] sm:$0xff] %vm433, %v889
    %892 = vrot.lane.b32.xlu0 %v551, 104
    %v893 = vpop.permute.xlu0 %892
    %894 = vrot.lane.b32.xlu0 %v551, 72
    %v895 = vpop.permute.xlu0 %894
    %v897 = vsel %vm94, %v893, 0
    %v900 = vsel %vm94, %v895, 0
    %902 = vmatprep.subr.bf16.mxu0 0
    %903 = vmatpush1.bf16.xpose.msra.mxu0 %v900
    %904 = vmatprep.subr.bf16.mxu0 0
    %905 = vmatpush1.bf16.xpose.msra.mxu0 0
    %906 = vmatprep.subr.bf16.mxu0 0
    %907 = vmatpush1.bf16.xpose.msra.mxu0 0
    %908 = vmatprep.subr.bf16.mxu0 0
    %909 = vmatpush1.bf16.xpose.msra.mxu0 0
    %910 = vmatprep.subr.bf16.mxu0 0
    %911 = vmatpush1.bf16.xpose.msra.mxu0 0
    %912 = vmatprep.subr.bf16.mxu0 0
    %913 = vmatpush1.bf16.xpose.msra.mxu0 0
    %914 = vmatprep.subr.bf16.mxu0 0
    %915 = vmatpush1.bf16.xpose.msra.mxu0 0
    %916 = vmatprep.subr.bf16.mxu0 0
    %917 = vmatpush1.bf16.xpose.msra.mxu0 0
    %918 = vmatprep.subr.bf16.mxu0 0
    %919 = vmatpush1.bf16.xpose.msra.mxu0 0
    %920 = vmatprep.subr.bf16.mxu0 0
    %921 = vmatpush1.bf16.xpose.msra.mxu0 0
    %922 = vmatprep.subr.bf16.mxu0 0
    %923 = vmatpush1.bf16.xpose.msra.mxu0 0
    %924 = vmatprep.subr.bf16.mxu0 0
    %925 = vmatpush1.bf16.xpose.msra.mxu0 0
    %926 = vmatprep.subr.bf16.mxu0 0
    %927 = vmatpush1.bf16.xpose.msra.mxu0 0
    %928 = vmatprep.subr.bf16.mxu0 0
    %929 = vmatpush1.bf16.xpose.msra.mxu0 0
    %930 = vmatprep.subr.bf16.mxu0 0
    %931 = vmatpush1.bf16.xpose.msra.mxu0 0
    %932 = vmatprep.subr.bf16.mxu0 0
    %933 = vmatpush1.bf16.xpose.msra.mxu0 0
    %934 = vmatprep.mubr.bf16.mxu0 0
    %935 = vmatmul.mubr.bf16.gmra.mrb[0].mxu0 %v897
    %v936 = vpop.f32.mrb[0].mxu0
    %v937 = vadd.f32 0.0, %v936
    %v938 = vpop.f32.mrb[0].mxu0
    %v939 = vpop.f32.mrb[0].mxu0
    %v940 = vpop.f32.mrb[0].mxu0
    %941 = vdwg.mxu0
    %v942 = vsel %vm94, %v937, -inf
    %943 = vmax.xlane.f32.xlu0 %v942
    %v944 = vpop.xlane.xlu0 %943
    %v945 = vsub.f32 %v937, %v944
    %v946 = vmul.f32 %v945, 1.442695
    %v947 = vpow.pop %v946
    %v948 = vsel %vm94, %v947, 0.0
    %949 = vadd.xlane.f32.xlu0 %v948
    %v950 = vpop.xlane.xlu0 %949
    %v951 = vrcp.pop %v950
    %v952 = vmul.f32 %v947, %v951
    %v953 = vpack.c.bf16 %v952, %v952
    %954 = vrot.lane.b32.xlu0 %v551, 40
    %v955 = vpop.permute.xlu0 %954
    %v957 = vsel %vm94, %v953, 0
    %v960 = vsel %vm158, %v955, 0
    %962 = vmatprep.subr.bf16.mxu0 0
    %963 = vmatpush1.bf16.msra.mxu0 %v960
    %964 = vmatprep.subr.bf16.mxu0 0
    %965 = vmatpush1.bf16.msra.mxu0 0
    %966 = vmatprep.subr.bf16.mxu0 0
    %967 = vmatpush1.bf16.msra.mxu0 0
    %968 = vmatprep.subr.bf16.mxu0 0
    %969 = vmatpush1.bf16.msra.mxu0 0
    %970 = vmatprep.subr.bf16.mxu0 0
    %971 = vmatpush1.bf16.msra.mxu0 0
    %972 = vmatprep.subr.bf16.mxu0 0
    %973 = vmatpush1.bf16.msra.mxu0 0
    %974 = vmatprep.subr.bf16.mxu0 0
    %975 = vmatpush1.bf16.msra.mxu0 0
    %976 = vmatprep.subr.bf16.mxu0 0
    %977 = vmatpush1.bf16.msra.mxu0 0
    %978 = vmatprep.subr.bf16.mxu0 0
    %979 = vmatpush1.bf16.msra.mxu0 0
    %980 = vmatprep.subr.bf16.mxu0 0
    %981 = vmatpush1.bf16.msra.mxu0 0
    %982 = vmatprep.subr.bf16.mxu0 0
    %983 = vmatpush1.bf16.msra.mxu0 0
    %984 = vmatprep.subr.bf16.mxu0 0
    %985 = vmatpush1.bf16.msra.mxu0 0
    %986 = vmatprep.subr.bf16.mxu0 0
    %987 = vmatpush1.bf16.msra.mxu0 0
    %988 = vmatprep.subr.bf16.mxu0 0
    %989 = vmatpush1.bf16.msra.mxu0 0
    %990 = vmatprep.subr.bf16.mxu0 0
    %991 = vmatpush1.bf16.msra.mxu0 0
    %992 = vmatprep.subr.bf16.mxu0 0
    %993 = vmatpush1.bf16.msra.mxu0 0
    %994 = vmatprep.mubr.bf16.mxu0 0
    %995 = vmatmul.mubr.bf16.gmra.mrb[0].mxu0 %v957
    %v996 = vpop.f32.mrb[0].mxu0
    %v997 = vadd.f32 0.0, %v996
    %v998 = vpop.f32.mrb[0].mxu0
    %v999 = vpop.f32.mrb[0].mxu0
    %v1000 = vpop.f32.mrb[0].mxu0
    %1001 = vdwg.mxu0
    %1003 = vrot.lane.b32.xlu0 %v997, 24
    %v1004 = vpop.permute.xlu0 %1003
    %1006 = vst.msk [vmem:[#allocation2 + $0x8] sm:$0xff] %vm549, %v1004
    %v1007 = vld [vmem:[#allocation2] sm:$0xff]
    %v1008 = vld [vmem:[#allocation2 + $0x8] sm:$0xff]
    %v1009 = vpack.c.bf16 %v1008, %v1007
    %v1010 = vld [vmem:[%s1] sm:$0xf]
    %v1011 = vld [vmem:[%s1 + $0x8] sm:$0xf]
    %v1012 = vld [vmem:[%s1 + $0x10] sm:$0xf]
    %v1013 = vld [vmem:[%s1 + $0x18] sm:$0xf]
    %v1014 = vld [vmem:[%s3] sm:$0x1]
    %v1016 = vlaneseq
    %v1017 = vshrl.u32 %v1016, 7
    %v1018 = vsub.s32 0, %v1017
    %v1019 = vrot.slane %v1014, %v1018
    %v1024 = vunpack.c.l.b16 %v1010
    %v1025 = vunpack.c.l.b16 %v1011
    %v1026 = vunpack.c.l.b16 %v1012
    %v1027 = vunpack.c.l.b16 %v1013
    %v1028 = vpack.c.b16 %v1025, %v1024
    %v1029 = vpack.c.b16 %v1027, %v1026
    %1030 = vrot.lane.b32.xlu0 %v1028, 32
    %v1031 = vpop.permute.xlu0 %1030
    %1032 = vrot.lane.b32.xlu0 %v1029, 32
    %v1033 = vpop.permute.xlu0 %1032
    %1036 = vrot.lane.b32.xlu0 %v1019, 32
    %v1037 = vpop.permute.xlu0 %1036
    %v1040 = vsel %vm45, %v1009, 0
    %1042 = vmatprep.subr.bf16.mxu0 0
    %1043 = vmatpush1.bf16.msra.mxu0 %v1031
    %1044 = vmatprep.subr.bf16.mxu0 0
    %1045 = vmatpush1.bf16.msra.mxu0 %v1033
    %1046 = vmatprep.subr.bf16.mxu0 0
    %1047 = vmatpush1.bf16.msra.mxu0 0
    %1048 = vmatprep.subr.bf16.mxu0 0
    %1049 = vmatpush1.bf16.msra.mxu0 0
    %1050 = vmatprep.subr.bf16.mxu0 0
    %1051 = vmatpush1.bf16.msra.mxu0 0
    %1052 = vmatprep.subr.bf16.mxu0 0
    %1053 = vmatpush1.bf16.msra.mxu0 0
    %1054 = vmatprep.subr.bf16.mxu0 0
    %1055 = vmatpush1.bf16.msra.mxu0 0
    %1056 = vmatprep.subr.bf16.mxu0 0
    %1057 = vmatpush1.bf16.msra.mxu0 0
    %1058 = vmatprep.subr.bf16.mxu0 0
    %1059 = vmatpush1.bf16.msra.mxu0 0
    %1060 = vmatprep.subr.bf16.mxu0 0
    %1061 = vmatpush1.bf16.msra.mxu0 0
    %1062 = vmatprep.subr.bf16.mxu0 0
    %1063 = vmatpush1.bf16.msra.mxu0 0
    %1064 = vmatprep.subr.bf16.mxu0 0
    %1065 = vmatpush1.bf16.msra.mxu0 0
    %1066 = vmatprep.subr.bf16.mxu0 0
    %1067 = vmatpush1.bf16.msra.mxu0 0
    %1068 = vmatprep.subr.bf16.mxu0 0
    %1069 = vmatpush1.bf16.msra.mxu0 0
    %1070 = vmatprep.subr.bf16.mxu0 0
    %1071 = vmatpush1.bf16.msra.mxu0 0
    %1072 = vmatprep.subr.bf16.mxu0 0
    %1073 = vmatpush1.bf16.msra.mxu0 0
    %1074 = vmatprep.mubr.bf16.mxu0 0
    %1075 = vmatmul.mubr.bf16.gmra.mrb[0].mxu0 %v1040
    %v1076 = vpop.f32.mrb[0].mxu0
    %v1077 = vadd.f32 %v1037, %v1076
    %v1078 = vpop.f32.mrb[0].mxu0
    %v1079 = vpop.f32.mrb[0].mxu0
    %v1080 = vadd.f32 %v1037, %v1079
    %v1081 = vpop.f32.mrb[0].mxu0
    %1082 = vdwg.mxu0
    %v1083 = vld [vmem:[%s3 + $0x1] sm:$0x1]
    %v1084 = vld [vmem:[%s3 + $0x2] sm:$0x1]
    %v1085 = vadd.f32 %v19, %v1077
    %v1086 = vadd.f32 %v20, %v1080
    %v1087 = vsel %vm45, %v1085, 0.0
    %1088 = vadd.xlane.f32.xlu0 %v1087
    %v1089 = vpop.xlane.xlu0 %1088
    %v1090 = vsel %vm45, %v1086, 0.0
    %1091 = vadd.xlane.f32.xlu0 %v1090
    %v1092 = vpop.xlane.xlu0 %1091
    %v1093 = vrcp.pop 32.0
    %v1094 = vmul.f32 %v1089, %v1093
    %v1095 = vmul.f32 %v1092, %v1093
    %v1096 = vsub.f32 %v1085, %v1094
    %v1097 = vsub.f32 %v1086, %v1095
    %v1098 = vmul.f32 %v1096, %v1096
    %v1099 = vmul.f32 %v1097, %v1097
    %v1100 = vsel %vm45, %v1098, 0.0
    %1101 = vadd.xlane.f32.xlu0 %v1100
    %v1102 = vpop.xlane.xlu0 %1101
    %v1103 = vsel %vm45, %v1099, 0.0
    %1104 = vadd.xlane.f32.xlu0 %v1103
    %v1105 = vpop.xlane.xlu0 %1104
    %v1106 = vmul.f32 %v1102, %v1093
    %v1107 = vmul.f32 %v1105, %v1093
    %v1108 = vadd.f32 %v1106, 1e-05
    %v1109 = vadd.f32 %v1107, 1e-05
    %v1110 = vrsqrt.pop %v1108
    %v1111 = vrsqrt.pop %v1109
    %v1112 = vmul.f32 %v1096, %v1110
    %v1113 = vmul.f32 %v1097, %v1111
    %v1115 = vlaneseq
    %v1116 = vshrl.u32 %v1115, 7
    %v1117 = vsub.s32 0, %v1116
    %v1118 = vrot.slane %v1083, %v1117
    %1119 = vrot.lane.b32.xlu0 %v1118, 32
    %v1120 = vpop.permute.xlu0 %1119
    %v1122 = vmul.f32 %v1112, %v1120
    %v1123 = vmul.f32 %v1113, %v1120
    %v1125 = vlaneseq
    %v1126 = vshrl.u32 %v1125, 7
    %v1127 = vsub.s32 0, %v1126
    %v1128 = vrot.slane %v1084, %v1127
    %v1130 = vadd.f32 %v1122, %v1128
    %v1131 = vadd.f32 %v1123, %v1128
    %v1132 = vpack.c.bf16 %v1131, %v1130
    %v1133 = vld [vmem:[%s1 + $0x4] sm:$0xf]
    %v1134 = vld [vmem:[%s1 + $0xc] sm:$0xf]
    %v1135 = vld [vmem:[%s1 + $0x14] sm:$0xf]
    %v1136 = vld [vmem:[%s1 + $0x1c] sm:$0xf]
    %v1142 = vunpack.c.l.b16 %v1133
    %v1143 = vunpack.c.l.b16 %v1134
    %v1144 = vunpack.c.l.b16 %v1135
    %v1145 = vunpack.c.l.b16 %v1136
    %v1146 = vpack.c.b16 %v1143, %v1142
    %v1147 = vpack.c.b16 %v1145, %v1144
    %v1151 = vsel %vm45, %v1132, 0
    %1153 = vmatprep.subr.bf16.mxu0 0
    %1154 = vmatpush1.bf16.msra.mxu0 %v1146
    %1155 = vmatprep.subr.bf16.mxu0 0
    %1156 = vmatpush1.bf16.msra.mxu0 %v1147
    %1157 = vmatprep.subr.bf16.mxu0 0
    %1158 = vmatpush1.bf16.msra.mxu0 0
    %1159 = vmatprep.subr.bf16.mxu0 0
    %1160 = vmatpush1.bf16.msra.mxu0 0
    %1161 = vmatprep.subr.bf16.mxu0 0
    %1162 = vmatpush1.bf16.msra.mxu0 0
    %1163 = vmatprep.subr.bf16.mxu0 0
    %1164 = vmatpush1.bf16.msra.mxu0 0
    %1165 = vmatprep.subr.bf16.mxu0 0
    %1166 = vmatpush1.bf16.msra.mxu0 0
    %1167 = vmatprep.subr.bf16.mxu0 0
    %1168 = vmatpush1.bf16.msra.mxu0 0
    %1169 = vmatprep.subr.bf16.mxu0 0
    %1170 = vmatpush1.bf16.msra.mxu0 0
    %1171 = vmatprep.subr.bf16.mxu0 0
    %1172 = vmatpush1.bf16.msra.mxu0 0
    %1173 = vmatprep.subr.bf16.mxu0 0
    %1174 = vmatpush1.bf16.msra.mxu0 0
    %1175 = vmatprep.subr.bf16.mxu0 0
    %1176 = vmatpush1.bf16.msra.mxu0 0
    %1177 = vmatprep.subr.bf16.mxu0 0
    %1178 = vmatpush1.bf16.msra.mxu0 0
    %1179 = vmatprep.subr.bf16.mxu0 0
    %1180 = vmatpush1.bf16.msra.mxu0 0
    %1181 = vmatprep.subr.bf16.mxu0 0
    %1182 = vmatpush1.bf16.msra.mxu0 0
    %1183 = vmatprep.subr.bf16.mxu0 0
    %1184 = vmatpush1.bf16.msra.mxu0 0
    %1185 = vmatprep.mubr.bf16.mxu0 0
    %1186 = vmatmul.mubr.bf16.gmra.mrb[0].mxu0 %v1151
    %v1187 = vpop.f32.mrb[0].mxu0
    %v1188 = vadd.f32 %v1118, %v1187
    %v1189 = vpop.f32.mrb[0].mxu0
    %v1190 = vpop.f32.mrb[0].mxu0
    %v1191 = vadd.f32 %v1118, %v1190
    %v1192 = vpop.f32.mrb[0].mxu0
    %1193 = vdwg.mxu0
    %v1194 = vmax.f32 %v1188, 0.0
    %v1195 = vmax.f32 %v1191, 0.0
    %v1196 = vpack.c.bf16 %v1195, %v1194
    %v1197 = vld [vmem:[%s2] sm:$0xf]
    %v1198 = vld [vmem:[%s2 + $0x4] sm:$0xf]
    %v1199 = vld [vmem:[%s2 + $0x8] sm:$0xf]
    %v1200 = vld [vmem:[%s2 + $0xc] sm:$0xf]
    %v1201 = vld [vmem:[%s2 + $0x10] sm:$0xf]
    %v1202 = vld [vmem:[%s2 + $0x14] sm:$0xf]
    %v1203 = vld [vmem:[%s2 + $0x18] sm:$0xf]
    %v1204 = vld [vmem:[%s2 + $0x1c] sm:$0xf]
    %v1213 = vunpack.c.l.b16 %v1197
    %v1214 = vunpack.c.l.b16 %v1198
    %v1215 = vunpack.c.l.b16 %v1199
    %v1216 = vunpack.c.l.b16 %v1200
    %v1217 = vunpack.c.l.b16 %v1201
    %v1218 = vunpack.c.l.b16 %v1202
    %v1219 = vunpack.c.l.b16 %v1203
    %v1220 = vunpack.c.l.b16 %v1204
    %v1221 = vpack.c.b16 %v1214, %v1213
    %v1222 = vpack.c.b16 %v1216, %v1215
    %v1223 = vpack.c.b16 %v1218, %v1217
    %v1224 = vpack.c.b16 %v1220, %v1219
    %1229 = vrot.lane.b32.xlu0 %v1118, 64
    %v1230 = vpop.permute.xlu0 %1229
    %vm1232 = vcmask 523264
    %v1234 = vsel %vm1232, %v1196, 0
    %1236 = vmatprep.subr.bf16.mxu0 0
    %1237 = vmatpush1.bf16.msra.mxu0 %v1221
    %1238 = vmatprep.subr.bf16.mxu0 0
    %1239 = vmatpush1.bf16.msra.mxu0 %v1222
    %1240 = vmatprep.subr.bf16.mxu0 0
    %1241 = vmatpush1.bf16.msra.mxu0 %v1223
    %1242 = vmatprep.subr.bf16.mxu0 0
    %1243 = vmatpush1.bf16.msra.mxu0 %v1224
    %1244 = vmatprep.subr.bf16.mxu0 0
    %1245 = vmatpush1.bf16.msra.mxu0 0
    %1246 = vmatprep.subr.bf16.mxu0 0
    %1247 = vmatpush1.bf16.msra.mxu0 0
    %1248 = vmatprep.subr.bf16.mxu0 0
    %1249 = vmatpush1.bf16.msra.mxu0 0
    %1250 = vmatprep.subr.bf16.mxu0 0
    %1251 = vmatpush1.bf16.msra.mxu0 0
    %1252 = vmatprep.subr.bf16.mxu0 0
    %1253 = vmatpush1.bf16.msra.mxu0 0
    %1254 = vmatprep.subr.bf16.mxu0 0
    %1255 = vmatpush1.bf16.msra.mxu0 0
    %1256 = vmatprep.subr.bf16.mxu0 0
    %1257 = vmatpush1.bf16.msra.mxu0 0
    %1258 = vmatprep.subr.bf16.mxu0 0
    %1259 = vmatpush1.bf16.msra.mxu0 0
    %1260 = vmatprep.subr.bf16.mxu0 0
    %1261 = vmatpush1.bf16.msra.mxu0 0
    %1262 = vmatprep.subr.bf16.mxu0 0
    %1263 = vmatpush1.bf16.msra.mxu0 0
    %1264 = vmatprep.subr.bf16.mxu0 0
    %1265 = vmatpush1.bf16.msra.mxu0 0
    %1266 = vmatprep.subr.bf16.mxu0 0
    %1267 = vmatpush1.bf16.msra.mxu0 0
    %1268 = vmatprep.mubr.bf16.mxu0 0
    %1269 = vmatmul.mubr.bf16.gmra.mrb[0].mxu0 %v1234
    %v1270 = vpop.f32.mrb[0].mxu0
    %v1271 = vadd.f32 %v1230, %v1270
    %v1272 = vpop.f32.mrb[0].mxu0
    %v1273 = vpop.f32.mrb[0].mxu0
    %v1274 = vadd.f32 %v1230, %v1273
    %v1275 = vpop.f32.mrb[0].mxu0
    %1276 = vdwg.mxu0
    %v1277 = vadd.f32 %v1130, %v1271
    %v1278 = vadd.f32 %v1131, %v1274
    %v1279 = vsel %vm45, %v1277, 0.0
    %1280 = vadd.xlane.f32.xlu0 %v1279
    %v1281 = vpop.xlane.xlu0 %1280
    %v1282 = vsel %vm45, %v1278, 0.0
    %1283 = vadd.xlane.f32.xlu0 %v1282
    %v1284 = vpop.xlane.xlu0 %1283
    %v1285 = vmul.f32 %v1281, %v1093
    %v1286 = vmul.f32 %v1284, %v1093
    %v1287 = vsub.f32 %v1277, %v1285
    %v1288 = vsub.f32 %v1278, %v1286
    %v1289 = vmul.f32 %v1287, %v1287
    %v1290 = vmul.f32 %v1288, %v1288
    %v1291 = vsel %vm45, %v1289, 0.0
    %1292 = vadd.xlane.f32.xlu0 %v1291
    %v1293 = vpop.xlane.xlu0 %1292
    %v1294 = vsel %vm45, %v1290, 0.0
    %1295 = vadd.xlane.f32.xlu0 %v1294
    %v1296 = vpop.xlane.xlu0 %1295
    %v1297 = vmul.f32 %v1293, %v1093
    %v1298 = vmul.f32 %v1296, %v1093
    %v1299 = vadd.f32 %v1297, 1e-05
    %v1300 = vadd.f32 %v1298, 1e-05
    %v1301 = vrsqrt.pop %v1299
    %v1302 = vrsqrt.pop %v1300
    %v1303 = vmul.f32 %v1287, %v1301
    %v1304 = vmul.f32 %v1288, %v1302
    %v1305 = vmul.f32 %v1303, %v1120
    %v1306 = vmul.f32 %v1304, %v1120
    %v1307 = vadd.f32 %v1305, %v1128
    %v1308 = vadd.f32 %v1306, %v1128
    %1309 = vst.msk [vmem:[#allocation3] sm:$0xff] %vm45, %v1307
    %1310 = vst.msk [vmem:[#allocation3 + $0x8] sm:$0xff] %vm45, %v1308
    // Predicated region
    $region18: #{tpu_custom_call.1} parent=1 // pred_check
      _
    $region19: #{tpu_custom_call.1} parent=1 // pred_check_branch
      %1312 = sbr.rel (0) target = $region21
    $region20: #{tpu_custom_call.1} parent=1 // pred_region
      %s1314 = ssub.s32 256, 256
      %1315 = vsyncadd [#allocation4], %s1314
      %s1316 = sshll.u32 [#allocation3], 4
      %s1317 = int_to_ptr.vmem [resolvable:$true] %s1316
      %1322 = dma.vmem_to_hbm [thread:$0]  %s1317, 256, %s4, [#allocation4], 128, 128, 8
    $region21: #{tpu_custom_call.1} parent=1 // pred_fallthru
      _
    // Predicated region
    $region22: #{tpu_custom_call.1} parent=1 // pred_check
      _
    $region23: #{tpu_custom_call.1} parent=1 // pred_check_branch
      %1324 = sbr.rel (0) target = $region25
    $region24: #{tpu_custom_call.1} parent=1 // pred_region
      %1325 = dma.done [#allocation4], 256
    $region25: #{tpu_custom_call.1} parent=1 // pred_fallthru
      _
    %1326 = vsyncpa [#allocation4], 1

</llo_original>
